<compile_context>
chip_gen: v6e
topology: v6e:2x2x1
jax: 0.10.0
libtpu: 0.0.40
codegen_flags: <defaults>
</compile_context>

<pallas_src>
import jax
import jax.numpy as jnp
from jax.experimental import pallas as pl
from jax.experimental.pallas import tpu as pltpu

# ----- hyper-parameters implied by the PyTorch module ------------------------
# TODO(synk): vocab_size comes from ../data/1Metabolite.csv in the original; a synthetic
# value is used here.
VOCAB_SIZE = 40
EMBED_DIM = 128
CONV_OUT = 32
KERNEL_SIZE = 3
SEQ_LEN = 50                               # fc1 = Linear(32*24, 128) => (50-2)//2 == 24
CONV_LEN = SEQ_LEN - KERNEL_SIZE + 1       # 48
POOL_LEN = CONV_LEN // 2                   # 24
FLAT_DIM = CONV_OUT * POOL_LEN             # 768 = 6*128 (lane-dense)
HIDDEN = 128
OUTPUT_SIZE = 20

B_TILE = 8                                 # batch elements per grid step (raise for big B)
ROWS = SEQ_LEN * B_TILE                    # 400 rows per tile, row index = t*B_TILE + b
CONV_ROWS = CONV_LEN * B_TILE              # 384


# ----- fused kernel -----------------------------------------------------------
def cnn_fused_kernel(ids_ref, emb_tbl_ref, wc_ref, bc_ref, w1_ref, b1_ref,
                     w2_ref, b2_ref, out_ref, flat_ref):
    # ids_ref:     (ROWS, 1) int32          row = t*B_TILE + b
    # emb_tbl_ref: (VOCAB, EMBED) bf16      embedding table (row 0 = padding_idx, zeros)
    # wc_ref:      (EMBED, 3*CONV_OUT) bf16 conv weights, [d, k*32+c] = W[c, d, k]
    # bc_ref:      (1, CONV_OUT) f32
    # w1_ref:      (FLAT_DIM, HIDDEN) bf16  fc1 weights pre-permuted to pos-major layout
    # b1_ref:      (1, HIDDEN) f32
    # w2_ref:      (HIDDEN, OUTPUT) bf16
    # b2_ref:      (1, OUTPUT) f32
    # out_ref:     (B_TILE, OUTPUT) f32
    # flat_ref:    (B_TILE, FLAT_DIM) bf16  VMEM scratch (lane-dense flattened activations)

    # Embedding gather as a one-hot matmul on the MXU (exact: one 1.0 per row).
    ids = ids_ref[...]                                                    # (ROWS, 1)
    vocab_iota = jax.lax.broadcasted_iota(jnp.int32, (ROWS, VOCAB_SIZE), 1)
    onehot = (vocab_iota == ids).astype(jnp.bfloat16)                     # (ROWS, V)
    emb = jnp.dot(onehot, emb_tbl_ref[...],
                  preferred_element_type=jnp.float32).astype(jnp.bfloat16)  # (ROWS, D)

    # Conv1d(k=3, valid) as ONE matmul; combine the three 32-lane tap groups with
    # 8-aligned row shifts (one time step = B_TILE rows).
    y = jnp.dot(emb, wc_ref[...], preferred_element_type=jnp.float32)     # (ROWS, 96)
    conv = (y[0:CONV_ROWS, 0:CONV_OUT]
            + y[B_TILE:B_TILE + CONV_ROWS, CONV_OUT:2 * CONV_OUT]
            + y[2 * B_TILE:2 * B_TILE + CONV_ROWS, 2 * CONV_OUT:3 * CONV_OUT]
            + bc_ref[...])                                                # (CONV_ROWS, 32)

    # MaxPool1d(2) + flatten: pooled position jj is the max of two consecutive
    # B_TILE-row blocks; write it into lane group jj of the (B_TILE, 768) slab.
    for jj in range(POOL_LEN):
        lo = (2 * jj) * B_TILE
        hi = (2 * jj + 1) * B_TILE
        pooled_jj = jnp.maximum(conv[lo:lo + B_TILE, :],
                                conv[hi:hi + B_TILE, :])                  # (B_TILE, 32)
        flat_ref[:, jj * CONV_OUT:(jj + 1) * CONV_OUT] = pooled_jj.astype(jnp.bfloat16)

    # fc1 -> fc2 (Dropout(0.2) is identity at inference).
    h = jnp.dot(flat_ref[...], w1_ref[...],
                preferred_element_type=jnp.float32) + b1_ref[...]         # (B_TILE, 128)
    out_ref[...] = (jnp.dot(h.astype(jnp.bfloat16), w2_ref[...],
                            preferred_element_type=jnp.float32) + b2_ref[...])


# ----- wrapper ----------------------------------------------------------------
@jax.jit
def cnn_forward(x_ids, params):
    B = x_ids.shape[0]
    n_tiles = pl.cdiv(B, B_TILE)
    Bp = n_tiles * B_TILE

    ids = x_ids.astype(jnp.int32)
    if Bp != B:                                   # pad with padding_idx=0
        ids = jnp.concatenate([ids, jnp.zeros((Bp - B, SEQ_LEN), jnp.int32)], axis=0)
    # Reorder each tile to t-major / batch-minor rows: row = t*B_TILE + b.
    ids_tiles = jnp.transpose(ids.reshape(n_tiles, B_TILE, SEQ_LEN), (0, 2, 1))
    ids_flat = ids_tiles.reshape(n_tiles * ROWS, 1)

    # Re-layout PyTorch-convention parameters for the kernel (tiny, one-off).
    emb_tbl = params['embedding'].astype(jnp.bfloat16)                     # (V, D)
    wc = jnp.transpose(params['conv_w'], (1, 2, 0)).reshape(
        EMBED_DIM, KERNEL_SIZE * CONV_OUT).astype(jnp.bfloat16)            # (D, 3*C)
    bc = params['conv_b'][None, :].astype(jnp.float32)                     # (1, C)
    # fc1 acts on PyTorch's channel-major flatten (index c*24+jj); permute to the
    # kernel's pos-major layout (index jj*32+c).
    w1 = jnp.transpose(params['fc1_w'].reshape(HIDDEN, CONV_OUT, POOL_LEN),
                       (2, 1, 0)).reshape(FLAT_DIM, HIDDEN).astype(jnp.bfloat16)
    b1 = params['fc1_b'][None, :].astype(jnp.float32)
    w2 = params['fc2_w'].T.astype(jnp.bfloat16)                            # (H, O)
    b2 = params['fc2_b'][None, :].astype(jnp.float32)

    out = pl.pallas_call(
        cnn_fused_kernel,
        out_shape=jax.ShapeDtypeStruct((Bp, OUTPUT_SIZE), jnp.float32),
        grid=(n_tiles,),
        in_specs=[
            pl.BlockSpec((ROWS, 1), lambda i: (i, 0)),
            pl.BlockSpec((VOCAB_SIZE, EMBED_DIM), lambda i: (0, 0)),
            pl.BlockSpec((EMBED_DIM, KERNEL_SIZE * CONV_OUT), lambda i: (0, 0)),
            pl.BlockSpec((1, CONV_OUT), lambda i: (0, 0)),
            pl.BlockSpec((FLAT_DIM, HIDDEN), lambda i: (0, 0)),
            pl.BlockSpec((1, HIDDEN), lambda i: (0, 0)),
            pl.BlockSpec((HIDDEN, OUTPUT_SIZE), lambda i: (0, 0)),
            pl.BlockSpec((1, OUTPUT_SIZE), lambda i: (0, 0)),
        ],
        out_specs=pl.BlockSpec((B_TILE, OUTPUT_SIZE), lambda i: (i, 0)),
        scratch_shapes=[pltpu.VMEM((B_TILE, FLAT_DIM), jnp.bfloat16)],
        compiler_params=pltpu.CompilerParams(dimension_semantics=("parallel",)),
    )(ids_flat, emb_tbl, wc, bc, w1, b1, w2, b2)
    return out[:B]


# ----- parameters & pure-JAX reference -----------------------------------------
def init_params(key):
    ks = jax.random.split(key, 7)
    emb = jax.random.normal(ks[0], (VOCAB_SIZE, EMBED_DIM), jnp.float32) * 0.1
    emb = emb.at[0].set(0.0)                                    # padding_idx=0
    conv_w = jax.random.normal(ks[1], (CONV_OUT, EMBED_DIM, KERNEL_SIZE)) * 0.05
    conv_b = jax.random.normal(ks[2], (CONV_OUT,)) * 0.05
    fc1_w = jax.random.normal(ks[3], (HIDDEN, CONV_OUT * POOL_LEN)) * 0.05
    fc1_b = jax.random.normal(ks[4], (HIDDEN,)) * 0.05
    fc2_w = jax.random.normal(ks[5], (OUTPUT_SIZE, HIDDEN)) * 0.05
    fc2_b = jax.random.normal(ks[6], (OUTPUT_SIZE,)) * 0.05
    return dict(embedding=emb, conv_w=conv_w, conv_b=conv_b,
                fc1_w=fc1_w, fc1_b=fc1_b, fc2_w=fc2_w, fc2_b=fc2_b)


def reference_forward(x_ids, p):
    # Pure-JAX f32 reference mirroring the PyTorch NCL conv exactly.
    emb = p['embedding'][x_ids]                                 # (B, L, D)
    xin = jnp.transpose(emb, (0, 2, 1))                         # (B, D, L)
    conv = jax.lax.conv_general_dilated(
        xin, p['conv_w'], window_strides=(1,), padding='VALID',
        dimension_numbers=('NCH', 'OIH', 'NCH'),
        precision=jax.lax.Precision.HIGHEST)
    conv = conv + p['conv_b'][None, :, None]                    # (B, 32, 48)
    pooled = jnp.max(conv.reshape(conv.shape[0], CONV_OUT, POOL_LEN, 2), axis=-1)
    flat = pooled.reshape(conv.shape[0], -1)                    # (B, 768) channel-major
    h = jnp.dot(flat, p['fc1_w'].T, precision=jax.lax.Precision.HIGHEST) + p['fc1_b']
    return jnp.dot(h, p['fc2_w'].T, precision=jax.lax.Precision.HIGHEST) + p['fc2_b']


if __name__ == "__main__":
    key = jax.random.PRNGKey(0)
    pkey, xkey = jax.random.split(key)
    params = init_params(pkey)
    x = jax.random.randint(xkey, (2, SEQ_LEN), 0, VOCAB_SIZE, dtype=jnp.int32)

    out = jax.block_until_ready(cnn_forward(x, params))
    assert out.shape == (2, OUTPUT_SIZE), out.shape

    ref = reference_forward(x, params)
    max_err = float(jnp.max(jnp.abs(out - ref)))
    # Kernel runs its matmuls in bf16 (f32 accumulation); reference is full f32.
    assert jnp.allclose(out, ref, atol=2e-2, rtol=2e-2), max_err

    print("KERNEL_OK")
</pallas_src>

<mosaic_0001>
module attributes {stable_mosaic.version = 11 : i64} {
  func.func @cnn_fused_kernel(%arg0: i32, %arg1: memref<400x1xi32, #tpu.memory_space<vmem>>, %arg2: memref<40x128xbf16, #tpu.memory_space<vmem>>, %arg3: memref<128x96xbf16, #tpu.memory_space<vmem>>, %arg4: memref<1x32xf32, #tpu.memory_space<vmem>>, %arg5: memref<768x128xbf16, #tpu.memory_space<vmem>>, %arg6: memref<1x128xf32, #tpu.memory_space<vmem>>, %arg7: memref<128x20xbf16, #tpu.memory_space<vmem>>, %arg8: memref<1x20xf32, #tpu.memory_space<vmem>>, %arg9: memref<8x20xf32, #tpu.memory_space<vmem>>, %arg10: memref<8x768xbf16, #tpu.memory_space<vmem>>) attributes {dimension_semantics = [#tpu.dimension_semantics<parallel>], iteration_bounds = array<i64: 1>, scalar_prefetch = 0 : i64, scratch_operands = 1 : i64, tpu.core_type = #tpu.core_type<tc>, window_params = [{transform_indices = @transform_0, window_bounds = array<i64: 400, 1>}, {pipeline_mode = #tpu.pipeline_mode<synchronous>, transform_indices = @transform_1, window_bounds = array<i64: 40, 128>}, {pipeline_mode = #tpu.pipeline_mode<synchronous>, transform_indices = @transform_2, window_bounds = array<i64: 128, 96>}, {pipeline_mode = #tpu.pipeline_mode<synchronous>, transform_indices = @transform_3, window_bounds = array<i64: 1, 32>}, {pipeline_mode = #tpu.pipeline_mode<synchronous>, transform_indices = @transform_4, window_bounds = array<i64: 768, 128>}, {pipeline_mode = #tpu.pipeline_mode<synchronous>, transform_indices = @transform_5, window_bounds = array<i64: 1, 128>}, {pipeline_mode = #tpu.pipeline_mode<synchronous>, transform_indices = @transform_6, window_bounds = array<i64: 128, 20>}, {pipeline_mode = #tpu.pipeline_mode<synchronous>, transform_indices = @transform_7, window_bounds = array<i64: 1, 20>}, {transform_indices = @transform_8, window_bounds = array<i64: 8, 20>}]} {
    %c0 = arith.constant 0 : index
    %c0_0 = arith.constant 0 : index
    %0 = vector.load %arg1[%c0, %c0_0] : memref<400x1xi32, #tpu.memory_space<vmem>>, vector<400x1xi32>
    %1 = tpu.iota {dimensions = array<i32: 1>} : vector<400x40xi32>
    %2 = vector.broadcast %0 : vector<400x1xi32> to vector<400x40xi32>
    %3 = arith.cmpi eq, %1, %2 : vector<400x40xi32>
    %4 = arith.extui %3 : vector<400x40xi1> to vector<400x40xi32>
    %5 = arith.sitofp %4 : vector<400x40xi32> to vector<400x40xf32>
    %6 = arith.truncf %5 : vector<400x40xf32> to vector<400x40xbf16>
    %c0_1 = arith.constant 0 : index
    %c0_2 = arith.constant 0 : index
    %7 = vector.load %arg2[%c0_1, %c0_2] : memref<40x128xbf16, #tpu.memory_space<vmem>>, vector<40x128xbf16>
    %cst = arith.constant dense<0.000000e+00> : vector<400x128xf32>
    %8 = tpu.matmul %6, %7, %cst {dimension_numbers = #tpu.dot_dimension_numbers<[1], [0], [0], [1], [0, 0, 1, 1], [], []>} : vector<400x40xbf16>, vector<40x128xbf16>, vector<400x128xf32> -> vector<400x128xf32>
    %9 = arith.truncf %8 : vector<400x128xf32> to vector<400x128xbf16>
    %c0_3 = arith.constant 0 : index
    %c0_4 = arith.constant 0 : index
    %10 = vector.load %arg3[%c0_3, %c0_4] : memref<128x96xbf16, #tpu.memory_space<vmem>>, vector<128x96xbf16>
    %cst_5 = arith.constant dense<0.000000e+00> : vector<400x96xf32>
    %11 = tpu.matmul %9, %10, %cst_5 {dimension_numbers = #tpu.dot_dimension_numbers<[1], [0], [0], [1], [0, 0, 1, 1], [], []>} : vector<400x128xbf16>, vector<128x96xbf16>, vector<400x96xf32> -> vector<400x96xf32>
    %12 = vector.extract_strided_slice %11 {offsets = [0, 0], sizes = [384, 32], strides = [1, 1]} : vector<400x96xf32> to vector<384x32xf32>
    %13 = vector.extract_strided_slice %11 {offsets = [8, 32], sizes = [384, 32], strides = [1, 1]} : vector<400x96xf32> to vector<384x32xf32>
    %14 = arith.addf %12, %13 : vector<384x32xf32>
    %15 = vector.extract_strided_slice %11 {offsets = [16, 64], sizes = [384, 32], strides = [1, 1]} : vector<400x96xf32> to vector<384x32xf32>
    %16 = arith.addf %14, %15 : vector<384x32xf32>
    %c0_6 = arith.constant 0 : index
    %c0_7 = arith.constant 0 : index
    %17 = vector.load %arg4[%c0_6, %c0_7] : memref<1x32xf32, #tpu.memory_space<vmem>>, vector<1x32xf32>
    %18 = vector.broadcast %17 : vector<1x32xf32> to vector<384x32xf32>
    %19 = arith.addf %16, %18 : vector<384x32xf32>
    %20 = vector.extract_strided_slice %19 {offsets = [0, 0], sizes = [8, 32], strides = [1, 1]} : vector<384x32xf32> to vector<8x32xf32>
    %21 = vector.extract_strided_slice %19 {offsets = [8, 0], sizes = [8, 32], strides = [1, 1]} : vector<384x32xf32> to vector<8x32xf32>
    %22 = arith.maximumf %20, %21 : vector<8x32xf32>
    %23 = arith.truncf %22 : vector<8x32xf32> to vector<8x32xbf16>
    %c0_8 = arith.constant 0 : index
    %c0_9 = arith.constant 0 : index
    %24 = vector.load %arg10[%c0_8, %c0_9] : memref<8x768xbf16, #tpu.memory_space<vmem>>, vector<8x32xbf16>
    tpu.vector_store %arg10[%c0_8, %c0_9], %23 {strides = array<i32>} : memref<8x768xbf16, #tpu.memory_space<vmem>>, vector<8x32xbf16>,
    %25 = vector.extract_strided_slice %19 {offsets = [16, 0], sizes = [8, 32], strides = [1, 1]} : vector<384x32xf32> to vector<8x32xf32>
    %26 = vector.extract_strided_slice %19 {offsets = [24, 0], sizes = [8, 32], strides = [1, 1]} : vector<384x32xf32> to vector<8x32xf32>
    %27 = arith.maximumf %25, %26 : vector<8x32xf32>
    %28 = arith.truncf %27 : vector<8x32xf32> to vector<8x32xbf16>
    %c0_10 = arith.constant 0 : index
    %c32 = arith.constant 32 : index
    %29 = vector.load %arg10[%c0_10, %c32] : memref<8x768xbf16, #tpu.memory_space<vmem>>, vector<8x32xbf16>
    tpu.vector_store %arg10[%c0_10, %c32], %28 {strides = array<i32>} : memref<8x768xbf16, #tpu.memory_space<vmem>>, vector<8x32xbf16>,
    %30 = vector.extract_strided_slice %19 {offsets = [32, 0], sizes = [8, 32], strides = [1, 1]} : vector<384x32xf32> to vector<8x32xf32>
    %31 = vector.extract_strided_slice %19 {offsets = [40, 0], sizes = [8, 32], strides = [1, 1]} : vector<384x32xf32> to vector<8x32xf32>
    %32 = arith.maximumf %30, %31 : vector<8x32xf32>
    %33 = arith.truncf %32 : vector<8x32xf32> to vector<8x32xbf16>
    %c0_11 = arith.constant 0 : index
    %c64 = arith.constant 64 : index
    %34 = vector.load %arg10[%c0_11, %c64] : memref<8x768xbf16, #tpu.memory_space<vmem>>, vector<8x32xbf16>
    tpu.vector_store %arg10[%c0_11, %c64], %33 {strides = array<i32>} : memref<8x768xbf16, #tpu.memory_space<vmem>>, vector<8x32xbf16>,
    %35 = vector.extract_strided_slice %19 {offsets = [48, 0], sizes = [8, 32], strides = [1, 1]} : vector<384x32xf32> to vector<8x32xf32>
    %36 = vector.extract_strided_slice %19 {offsets = [56, 0], sizes = [8, 32], strides = [1, 1]} : vector<384x32xf32> to vector<8x32xf32>
    %37 = arith.maximumf %35, %36 : vector<8x32xf32>
    %38 = arith.truncf %37 : vector<8x32xf32> to vector<8x32xbf16>
    %c0_12 = arith.constant 0 : index
    %c96 = arith.constant 96 : index
    %39 = vector.load %arg10[%c0_12, %c96] : memref<8x768xbf16, #tpu.memory_space<vmem>>, vector<8x32xbf16>
    tpu.vector_store %arg10[%c0_12, %c96], %38 {strides = array<i32>} : memref<8x768xbf16, #tpu.memory_space<vmem>>, vector<8x32xbf16>,
    %40 = vector.extract_strided_slice %19 {offsets = [64, 0], sizes = [8, 32], strides = [1, 1]} : vector<384x32xf32> to vector<8x32xf32>
    %41 = vector.extract_strided_slice %19 {offsets = [72, 0], sizes = [8, 32], strides = [1, 1]} : vector<384x32xf32> to vector<8x32xf32>
    %42 = arith.maximumf %40, %41 : vector<8x32xf32>
    %43 = arith.truncf %42 : vector<8x32xf32> to vector<8x32xbf16>
    %c0_13 = arith.constant 0 : index
    %c128 = arith.constant 128 : index
    %44 = vector.load %arg10[%c0_13, %c128] : memref<8x768xbf16, #tpu.memory_space<vmem>>, vector<8x32xbf16>
    tpu.vector_store %arg10[%c0_13, %c128], %43 {strides = array<i32>} : memref<8x768xbf16, #tpu.memory_space<vmem>>, vector<8x32xbf16>,
    %45 = vector.extract_strided_slice %19 {offsets = [80, 0], sizes = [8, 32], strides = [1, 1]} : vector<384x32xf32> to vector<8x32xf32>
    %46 = vector.extract_strided_slice %19 {offsets = [88, 0], sizes = [8, 32], strides = [1, 1]} : vector<384x32xf32> to vector<8x32xf32>
    %47 = arith.maximumf %45, %46 : vector<8x32xf32>
    %48 = arith.truncf %47 : vector<8x32xf32> to vector<8x32xbf16>
    %c0_14 = arith.constant 0 : index
    %c160 = arith.constant 160 : index
    %49 = vector.load %arg10[%c0_14, %c160] : memref<8x768xbf16, #tpu.memory_space<vmem>>, vector<8x32xbf16>
    tpu.vector_store %arg10[%c0_14, %c160], %48 {strides = array<i32>} : memref<8x768xbf16, #tpu.memory_space<vmem>>, vector<8x32xbf16>,
    %50 = vector.extract_strided_slice %19 {offsets = [96, 0], sizes = [8, 32], strides = [1, 1]} : vector<384x32xf32> to vector<8x32xf32>
    %51 = vector.extract_strided_slice %19 {offsets = [104, 0], sizes = [8, 32], strides = [1, 1]} : vector<384x32xf32> to vector<8x32xf32>
    %52 = arith.maximumf %50, %51 : vector<8x32xf32>
    %53 = arith.truncf %52 : vector<8x32xf32> to vector<8x32xbf16>
    %c0_15 = arith.constant 0 : index
    %c192 = arith.constant 192 : index
    %54 = vector.load %arg10[%c0_15, %c192] : memref<8x768xbf16, #tpu.memory_space<vmem>>, vector<8x32xbf16>
    tpu.vector_store %arg10[%c0_15, %c192], %53 {strides = array<i32>} : memref<8x768xbf16, #tpu.memory_space<vmem>>, vector<8x32xbf16>,
    %55 = vector.extract_strided_slice %19 {offsets = [112, 0], sizes = [8, 32], strides = [1, 1]} : vector<384x32xf32> to vector<8x32xf32>
    %56 = vector.extract_strided_slice %19 {offsets = [120, 0], sizes = [8, 32], strides = [1, 1]} : vector<384x32xf32> to vector<8x32xf32>
    %57 = arith.maximumf %55, %56 : vector<8x32xf32>
    %58 = arith.truncf %57 : vector<8x32xf32> to vector<8x32xbf16>
    %c0_16 = arith.constant 0 : index
    %c224 = arith.constant 224 : index
    %59 = vector.load %arg10[%c0_16, %c224] : memref<8x768xbf16, #tpu.memory_space<vmem>>, vector<8x32xbf16>
    tpu.vector_store %arg10[%c0_16, %c224], %58 {strides = array<i32>} : memref<8x768xbf16, #tpu.memory_space<vmem>>, vector<8x32xbf16>,
    %60 = vector.extract_strided_slice %19 {offsets = [128, 0], sizes = [8, 32], strides = [1, 1]} : vector<384x32xf32> to vector<8x32xf32>
    %61 = vector.extract_strided_slice %19 {offsets = [136, 0], sizes = [8, 32], strides = [1, 1]} : vector<384x32xf32> to vector<8x32xf32>
    %62 = arith.maximumf %60, %61 : vector<8x32xf32>
    %63 = arith.truncf %62 : vector<8x32xf32> to vector<8x32xbf16>
    %c0_17 = arith.constant 0 : index
    %c256 = arith.constant 256 : index
    %64 = vector.load %arg10[%c0_17, %c256] : memref<8x768xbf16, #tpu.memory_space<vmem>>, vector<8x32xbf16>
    tpu.vector_store %arg10[%c0_17, %c256], %63 {strides = array<i32>} : memref<8x768xbf16, #tpu.memory_space<vmem>>, vector<8x32xbf16>,
    %65 = vector.extract_strided_slice %19 {offsets = [144, 0], sizes = [8, 32], strides = [1, 1]} : vector<384x32xf32> to vector<8x32xf32>
    %66 = vector.extract_strided_slice %19 {offsets = [152, 0], sizes = [8, 32], strides = [1, 1]} : vector<384x32xf32> to vector<8x32xf32>
    %67 = arith.maximumf %65, %66 : vector<8x32xf32>
    %68 = arith.truncf %67 : vector<8x32xf32> to vector<8x32xbf16>
    %c0_18 = arith.constant 0 : index
    %c288 = arith.constant 288 : index
    %69 = vector.load %arg10[%c0_18, %c288] : memref<8x768xbf16, #tpu.memory_space<vmem>>, vector<8x32xbf16>
    tpu.vector_store %arg10[%c0_18, %c288], %68 {strides = array<i32>} : memref<8x768xbf16, #tpu.memory_space<vmem>>, vector<8x32xbf16>,
    %70 = vector.extract_strided_slice %19 {offsets = [160, 0], sizes = [8, 32], strides = [1, 1]} : vector<384x32xf32> to vector<8x32xf32>
    %71 = vector.extract_strided_slice %19 {offsets = [168, 0], sizes = [8, 32], strides = [1, 1]} : vector<384x32xf32> to vector<8x32xf32>
    %72 = arith.maximumf %70, %71 : vector<8x32xf32>
    %73 = arith.truncf %72 : vector<8x32xf32> to vector<8x32xbf16>
    %c0_19 = arith.constant 0 : index
    %c320 = arith.constant 320 : index
    %74 = vector.load %arg10[%c0_19, %c320] : memref<8x768xbf16, #tpu.memory_space<vmem>>, vector<8x32xbf16>
    tpu.vector_store %arg10[%c0_19, %c320], %73 {strides = array<i32>} : memref<8x768xbf16, #tpu.memory_space<vmem>>, vector<8x32xbf16>,
    %75 = vector.extract_strided_slice %19 {offsets = [176, 0], sizes = [8, 32], strides = [1, 1]} : vector<384x32xf32> to vector<8x32xf32>
    %76 = vector.extract_strided_slice %19 {offsets = [184, 0], sizes = [8, 32], strides = [1, 1]} : vector<384x32xf32> to vector<8x32xf32>
    %77 = arith.maximumf %75, %76 : vector<8x32xf32>
    %78 = arith.truncf %77 : vector<8x32xf32> to vector<8x32xbf16>
    %c0_20 = arith.constant 0 : index
    %c352 = arith.constant 352 : index
    %79 = vector.load %arg10[%c0_20, %c352] : memref<8x768xbf16, #tpu.memory_space<vmem>>, vector<8x32xbf16>
    tpu.vector_store %arg10[%c0_20, %c352], %78 {strides = array<i32>} : memref<8x768xbf16, #tpu.memory_space<vmem>>, vector<8x32xbf16>,
    %80 = vector.extract_strided_slice %19 {offsets = [192, 0], sizes = [8, 32], strides = [1, 1]} : vector<384x32xf32> to vector<8x32xf32>
    %81 = vector.extract_strided_slice %19 {offsets = [200, 0], sizes = [8, 32], strides = [1, 1]} : vector<384x32xf32> to vector<8x32xf32>
    %82 = arith.maximumf %80, %81 : vector<8x32xf32>
    %83 = arith.truncf %82 : vector<8x32xf32> to vector<8x32xbf16>
    %c0_21 = arith.constant 0 : index
    %c384 = arith.constant 384 : index
    %84 = vector.load %arg10[%c0_21, %c384] : memref<8x768xbf16, #tpu.memory_space<vmem>>, vector<8x32xbf16>
    tpu.vector_store %arg10[%c0_21, %c384], %83 {strides = array<i32>} : memref<8x768xbf16, #tpu.memory_space<vmem>>, vector<8x32xbf16>,
    %85 = vector.extract_strided_slice %19 {offsets = [208, 0], sizes = [8, 32], strides = [1, 1]} : vector<384x32xf32> to vector<8x32xf32>
    %86 = vector.extract_strided_slice %19 {offsets = [216, 0], sizes = [8, 32], strides = [1, 1]} : vector<384x32xf32> to vector<8x32xf32>
    %87 = arith.maximumf %85, %86 : vector<8x32xf32>
    %88 = arith.truncf %87 : vector<8x32xf32> to vector<8x32xbf16>
    %c0_22 = arith.constant 0 : index
    %c416 = arith.constant 416 : index
    %89 = vector.load %arg10[%c0_22, %c416] : memref<8x768xbf16, #tpu.memory_space<vmem>>, vector<8x32xbf16>
    tpu.vector_store %arg10[%c0_22, %c416], %88 {strides = array<i32>} : memref<8x768xbf16, #tpu.memory_space<vmem>>, vector<8x32xbf16>,
    %90 = vector.extract_strided_slice %19 {offsets = [224, 0], sizes = [8, 32], strides = [1, 1]} : vector<384x32xf32> to vector<8x32xf32>
    %91 = vector.extract_strided_slice %19 {offsets = [232, 0], sizes = [8, 32], strides = [1, 1]} : vector<384x32xf32> to vector<8x32xf32>
    %92 = arith.maximumf %90, %91 : vector<8x32xf32>
    %93 = arith.truncf %92 : vector<8x32xf32> to vector<8x32xbf16>
    %c0_23 = arith.constant 0 : index
    %c448 = arith.constant 448 : index
    %94 = vector.load %arg10[%c0_23, %c448] : memref<8x768xbf16, #tpu.memory_space<vmem>>, vector<8x32xbf16>
    tpu.vector_store %arg10[%c0_23, %c448], %93 {strides = array<i32>} : memref<8x768xbf16, #tpu.memory_space<vmem>>, vector<8x32xbf16>,
    %95 = vector.extract_strided_slice %19 {offsets = [240, 0], sizes = [8, 32], strides = [1, 1]} : vector<384x32xf32> to vector<8x32xf32>
    %96 = vector.extract_strided_slice %19 {offsets = [248, 0], sizes = [8, 32], strides = [1, 1]} : vector<384x32xf32> to vector<8x32xf32>
    %97 = arith.maximumf %95, %96 : vector<8x32xf32>
    %98 = arith.truncf %97 : vector<8x32xf32> to vector<8x32xbf16>
    %c0_24 = arith.constant 0 : index
    %c480 = arith.constant 480 : index
    %99 = vector.load %arg10[%c0_24, %c480] : memref<8x768xbf16, #tpu.memory_space<vmem>>, vector<8x32xbf16>
    tpu.vector_store %arg10[%c0_24, %c480], %98 {strides = array<i32>} : memref<8x768xbf16, #tpu.memory_space<vmem>>, vector<8x32xbf16>,
    %100 = vector.extract_strided_slice %19 {offsets = [256, 0], sizes = [8, 32], strides = [1, 1]} : vector<384x32xf32> to vector<8x32xf32>
    %101 = vector.extract_strided_slice %19 {offsets = [264, 0], sizes = [8, 32], strides = [1, 1]} : vector<384x32xf32> to vector<8x32xf32>
    %102 = arith.maximumf %100, %101 : vector<8x32xf32>
    %103 = arith.truncf %102 : vector<8x32xf32> to vector<8x32xbf16>
    %c0_25 = arith.constant 0 : index
    %c512 = arith.constant 512 : index
    %104 = vector.load %arg10[%c0_25, %c512] : memref<8x768xbf16, #tpu.memory_space<vmem>>, vector<8x32xbf16>
    tpu.vector_store %arg10[%c0_25, %c512], %103 {strides = array<i32>} : memref<8x768xbf16, #tpu.memory_space<vmem>>, vector<8x32xbf16>,
    %105 = vector.extract_strided_slice %19 {offsets = [272, 0], sizes = [8, 32], strides = [1, 1]} : vector<384x32xf32> to vector<8x32xf32>
    %106 = vector.extract_strided_slice %19 {offsets = [280, 0], sizes = [8, 32], strides = [1, 1]} : vector<384x32xf32> to vector<8x32xf32>
    %107 = arith.maximumf %105, %106 : vector<8x32xf32>
    %108 = arith.truncf %107 : vector<8x32xf32> to vector<8x32xbf16>
    %c0_26 = arith.constant 0 : index
    %c544 = arith.constant 544 : index
    %109 = vector.load %arg10[%c0_26, %c544] : memref<8x768xbf16, #tpu.memory_space<vmem>>, vector<8x32xbf16>
    tpu.vector_store %arg10[%c0_26, %c544], %108 {strides = array<i32>} : memref<8x768xbf16, #tpu.memory_space<vmem>>, vector<8x32xbf16>,
    %110 = vector.extract_strided_slice %19 {offsets = [288, 0], sizes = [8, 32], strides = [1, 1]} : vector<384x32xf32> to vector<8x32xf32>
    %111 = vector.extract_strided_slice %19 {offsets = [296, 0], sizes = [8, 32], strides = [1, 1]} : vector<384x32xf32> to vector<8x32xf32>
    %112 = arith.maximumf %110, %111 : vector<8x32xf32>
    %113 = arith.truncf %112 : vector<8x32xf32> to vector<8x32xbf16>
    %c0_27 = arith.constant 0 : index
    %c576 = arith.constant 576 : index
    %114 = vector.load %arg10[%c0_27, %c576] : memref<8x768xbf16, #tpu.memory_space<vmem>>, vector<8x32xbf16>
    tpu.vector_store %arg10[%c0_27, %c576], %113 {strides = array<i32>} : memref<8x768xbf16, #tpu.memory_space<vmem>>, vector<8x32xbf16>,
    %115 = vector.extract_strided_slice %19 {offsets = [304, 0], sizes = [8, 32], strides = [1, 1]} : vector<384x32xf32> to vector<8x32xf32>
    %116 = vector.extract_strided_slice %19 {offsets = [312, 0], sizes = [8, 32], strides = [1, 1]} : vector<384x32xf32> to vector<8x32xf32>
    %117 = arith.maximumf %115, %116 : vector<8x32xf32>
    %118 = arith.truncf %117 : vector<8x32xf32> to vector<8x32xbf16>
    %c0_28 = arith.constant 0 : index
    %c608 = arith.constant 608 : index
    %119 = vector.load %arg10[%c0_28, %c608] : memref<8x768xbf16, #tpu.memory_space<vmem>>, vector<8x32xbf16>
    tpu.vector_store %arg10[%c0_28, %c608], %118 {strides = array<i32>} : memref<8x768xbf16, #tpu.memory_space<vmem>>, vector<8x32xbf16>,
    %120 = vector.extract_strided_slice %19 {offsets = [320, 0], sizes = [8, 32], strides = [1, 1]} : vector<384x32xf32> to vector<8x32xf32>
    %121 = vector.extract_strided_slice %19 {offsets = [328, 0], sizes = [8, 32], strides = [1, 1]} : vector<384x32xf32> to vector<8x32xf32>
    %122 = arith.maximumf %120, %121 : vector<8x32xf32>
    %123 = arith.truncf %122 : vector<8x32xf32> to vector<8x32xbf16>
    %c0_29 = arith.constant 0 : index
    %c640 = arith.constant 640 : index
    %124 = vector.load %arg10[%c0_29, %c640] : memref<8x768xbf16, #tpu.memory_space<vmem>>, vector<8x32xbf16>
    tpu.vector_store %arg10[%c0_29, %c640], %123 {strides = array<i32>} : memref<8x768xbf16, #tpu.memory_space<vmem>>, vector<8x32xbf16>,
    %125 = vector.extract_strided_slice %19 {offsets = [336, 0], sizes = [8, 32], strides = [1, 1]} : vector<384x32xf32> to vector<8x32xf32>
    %126 = vector.extract_strided_slice %19 {offsets = [344, 0], sizes = [8, 32], strides = [1, 1]} : vector<384x32xf32> to vector<8x32xf32>
    %127 = arith.maximumf %125, %126 : vector<8x32xf32>
    %128 = arith.truncf %127 : vector<8x32xf32> to vector<8x32xbf16>
    %c0_30 = arith.constant 0 : index
    %c672 = arith.constant 672 : index
    %129 = vector.load %arg10[%c0_30, %c672] : memref<8x768xbf16, #tpu.memory_space<vmem>>, vector<8x32xbf16>
    tpu.vector_store %arg10[%c0_30, %c672], %128 {strides = array<i32>} : memref<8x768xbf16, #tpu.memory_space<vmem>>, vector<8x32xbf16>,
    %130 = vector.extract_strided_slice %19 {offsets = [352, 0], sizes = [8, 32], strides = [1, 1]} : vector<384x32xf32> to vector<8x32xf32>
    %131 = vector.extract_strided_slice %19 {offsets = [360, 0], sizes = [8, 32], strides = [1, 1]} : vector<384x32xf32> to vector<8x32xf32>
    %132 = arith.maximumf %130, %131 : vector<8x32xf32>
    %133 = arith.truncf %132 : vector<8x32xf32> to vector<8x32xbf16>
    %c0_31 = arith.constant 0 : index
    %c704 = arith.constant 704 : index
    %134 = vector.load %arg10[%c0_31, %c704] : memref<8x768xbf16, #tpu.memory_space<vmem>>, vector<8x32xbf16>
    tpu.vector_store %arg10[%c0_31, %c704], %133 {strides = array<i32>} : memref<8x768xbf16, #tpu.memory_space<vmem>>, vector<8x32xbf16>,
    %135 = vector.extract_strided_slice %19 {offsets = [368, 0], sizes = [8, 32], strides = [1, 1]} : vector<384x32xf32> to vector<8x32xf32>
    %136 = vector.extract_strided_slice %19 {offsets = [376, 0], sizes = [8, 32], strides = [1, 1]} : vector<384x32xf32> to vector<8x32xf32>
    %137 = arith.maximumf %135, %136 : vector<8x32xf32>
    %138 = arith.truncf %137 : vector<8x32xf32> to vector<8x32xbf16>
    %c0_32 = arith.constant 0 : index
    %c736 = arith.constant 736 : index
    %139 = vector.load %arg10[%c0_32, %c736] : memref<8x768xbf16, #tpu.memory_space<vmem>>, vector<8x32xbf16>
    tpu.vector_store %arg10[%c0_32, %c736], %138 {strides = array<i32>} : memref<8x768xbf16, #tpu.memory_space<vmem>>, vector<8x32xbf16>,
    %c0_33 = arith.constant 0 : index
    %c0_34 = arith.constant 0 : index
    %140 = vector.load %arg10[%c0_33, %c0_34] : memref<8x768xbf16, #tpu.memory_space<vmem>>, vector<8x768xbf16>
    %c0_35 = arith.constant 0 : index
    %c0_36 = arith.constant 0 : index
    %141 = vector.load %arg5[%c0_35, %c0_36] : memref<768x128xbf16, #tpu.memory_space<vmem>>, vector<768x128xbf16>
    %cst_37 = arith.constant dense<0.000000e+00> : vector<8x128xf32>
    %142 = tpu.matmul %140, %141, %cst_37 {dimension_numbers = #tpu.dot_dimension_numbers<[1], [0], [0], [1], [0, 0, 1, 1], [], []>} : vector<8x768xbf16>, vector<768x128xbf16>, vector<8x128xf32> -> vector<8x128xf32>
    %c0_38 = arith.constant 0 : index
    %c0_39 = arith.constant 0 : index
    %143 = vector.load %arg6[%c0_38, %c0_39] : memref<1x128xf32, #tpu.memory_space<vmem>>, vector<1x128xf32>
    %144 = vector.broadcast %143 : vector<1x128xf32> to vector<8x128xf32>
    %145 = arith.addf %142, %144 : vector<8x128xf32>
    %146 = arith.truncf %145 : vector<8x128xf32> to vector<8x128xbf16>
    %c0_40 = arith.constant 0 : index
    %c0_41 = arith.constant 0 : index
    %147 = vector.load %arg7[%c0_40, %c0_41] : memref<128x20xbf16, #tpu.memory_space<vmem>>, vector<128x20xbf16>
    %cst_42 = arith.constant dense<0.000000e+00> : vector<8x20xf32>
    %148 = tpu.matmul %146, %147, %cst_42 {dimension_numbers = #tpu.dot_dimension_numbers<[1], [0], [0], [1], [0, 0, 1, 1], [], []>} : vector<8x128xbf16>, vector<128x20xbf16>, vector<8x20xf32> -> vector<8x20xf32>
    %c0_43 = arith.constant 0 : index
    %c0_44 = arith.constant 0 : index
    %149 = vector.load %arg8[%c0_43, %c0_44] : memref<1x20xf32, #tpu.memory_space<vmem>>, vector<1x20xf32>
    %150 = vector.broadcast %149 : vector<1x20xf32> to vector<8x20xf32>
    %151 = arith.addf %148, %150 : vector<8x20xf32>
    %c0_45 = arith.constant 0 : index
    %c0_46 = arith.constant 0 : index
    %152 = vector.load %arg9[%c0_45, %c0_46] : memref<8x20xf32, #tpu.memory_space<vmem>>, vector<8x20xf32>
    tpu.vector_store %arg9[%c0_45, %c0_46], %151 {strides = array<i32>} : memref<8x20xf32, #tpu.memory_space<vmem>>, vector<8x20xf32>,
    return
  }
  func.func @transform_0(%arg0: i32) -> (i32, i32) {
    %c0_i32 = arith.constant 0 : i32
    %c0_i32_0 = arith.constant 0 : i32
    return %arg0, %c0_i32 : i32, i32
  }
  func.func @transform_1(%arg0: i32) -> (i32, i32) {
    %c0_i32 = arith.constant 0 : i32
    %c0_i32_0 = arith.constant 0 : i32
    %c0_i32_1 = arith.constant 0 : i32
    return %c0_i32, %c0_i32_0 : i32, i32
  }
  func.func @transform_2(%arg0: i32) -> (i32, i32) {
    %c0_i32 = arith.constant 0 : i32
    %c0_i32_0 = arith.constant 0 : i32
    %c0_i32_1 = arith.constant 0 : i32
    return %c0_i32, %c0_i32_0 : i32, i32
  }
  func.func @transform_3(%arg0: i32) -> (i32, i32) {
    %c0_i32 = arith.constant 0 : i32
    %c0_i32_0 = arith.constant 0 : i32
    %c0_i32_1 = arith.constant 0 : i32
    return %c0_i32, %c0_i32_0 : i32, i32
  }
  func.func @transform_4(%arg0: i32) -> (i32, i32) {
    %c0_i32 = arith.constant 0 : i32
    %c0_i32_0 = arith.constant 0 : i32
    %c0_i32_1 = arith.constant 0 : i32
    return %c0_i32, %c0_i32_0 : i32, i32
  }
  func.func @transform_5(%arg0: i32) -> (i32, i32) {
    %c0_i32 = arith.constant 0 : i32
    %c0_i32_0 = arith.constant 0 : i32
    %c0_i32_1 = arith.constant 0 : i32
    return %c0_i32, %c0_i32_0 : i32, i32
  }
  func.func @transform_6(%arg0: i32) -> (i32, i32) {
    %c0_i32 = arith.constant 0 : i32
    %c0_i32_0 = arith.constant 0 : i32
    %c0_i32_1 = arith.constant 0 : i32
    return %c0_i32, %c0_i32_0 : i32, i32
  }
  func.func @transform_7(%arg0: i32) -> (i32, i32) {
    %c0_i32 = arith.constant 0 : i32
    %c0_i32_0 = arith.constant 0 : i32
    %c0_i32_1 = arith.constant 0 : i32
    return %c0_i32, %c0_i32_0 : i32, i32
  }
  func.func @transform_8(%arg0: i32) -> (i32, i32) {
    %c0_i32 = arith.constant 0 : i32
    %c0_i32_0 = arith.constant 0 : i32
    return %arg0, %c0_i32 : i32, i32
  }
}

</mosaic_0001>

<llo_original>
// kernel: cnn_forward.1
$region0: #{cnn_forward.1}
  #allocation0 [shape = 'u32[]', space=smem, size = 0x4, offset = 0x4, fixed_abs, tag = 'smem constant byte address 0x4 - core index']
  #allocation1 [shape = 'u32[144,128]{1,0:T(1,128)}', space=vmem, size = 0x12000, scoped, tag = 'internal scratch']
  #allocation2 [shape = 'bf16[8,768]{1,0:T(8,128)(2,1)}', space=vmem, size = 0x3000, scoped, tag = 'scratch operand']
  %s0 = inlined_call_operand.vmem [shape: s32[400,1], index: 0, kind: input, shape index: {}]
  %s1 = inlined_call_operand.vmem [shape: bf16[40,128], index: 1, kind: input, shape index: {}]
  %s2 = inlined_call_operand.vmem [shape: bf16[128,96], index: 2, kind: input, shape index: {}]
  %s3 = inlined_call_operand.vmem [shape: f32[1,32], index: 3, kind: input, shape index: {}]
  %s4 = inlined_call_operand.vmem [shape: bf16[768,128], index: 4, kind: input, shape index: {}]
  %s5 = inlined_call_operand.vmem [shape: f32[1,128], index: 5, kind: input, shape index: {}]
  %s6 = inlined_call_operand.vmem [shape: bf16[128,20], index: 6, kind: input, shape index: {}]
  %s7 = inlined_call_operand.vmem [shape: f32[1,20], index: 7, kind: input, shape index: {}]
  %s8 = inlined_call_operand.vmem [shape: f32[8,20], index: 8, kind: output, shape index: {}]
  %s9 = sld [smem:[#allocation0]]
  $region42: #{cnn_forward.1} parent=0
    _
  %s11 = ssub.s32 1, %s9
  %s12 = scalar_select 0, %s11, %s9
  // Predicated region
  $region2: #{cnn_forward.1} parent=0 // pred_check
    _
  $region3: #{cnn_forward.1} parent=0 // pred_check_branch
    %14 = sbr.rel (0) target = $region5
  $region4: #{cnn_forward.1} parent=0 // pred_region
    _
  $region5: #{cnn_forward.1} parent=0 // pred_fallthru
    _
  // Predicated region
  $region6: #{cnn_forward.1} parent=0 // pred_check
    _
  $region7: #{cnn_forward.1} parent=0 // pred_check_branch
    %16 = sbr.rel (0) target = $region9
  $region8: #{cnn_forward.1} parent=0 // pred_region
    _
  $region9: #{cnn_forward.1} parent=0 // pred_fallthru
    _
  // Predicated region
  $region10: #{cnn_forward.1} parent=0 // pred_check
    _
  $region11: #{cnn_forward.1} parent=0 // pred_check_branch
    %18 = sbr.rel (0) target = $region13
  $region12: #{cnn_forward.1} parent=0 // pred_region
    _
  $region13: #{cnn_forward.1} parent=0 // pred_fallthru
    _
  // Predicated region
  $region14: #{cnn_forward.1} parent=0 // pred_check
    _
  $region15: #{cnn_forward.1} parent=0 // pred_check_branch
    %20 = sbr.rel (0) target = $region17
  $region16: #{cnn_forward.1} parent=0 // pred_region
    _
  $region17: #{cnn_forward.1} parent=0 // pred_fallthru
    _
  // Predicated region
  $region18: #{cnn_forward.1} parent=0 // pred_check
    _
  $region19: #{cnn_forward.1} parent=0 // pred_check_branch
    %22 = sbr.rel (0) target = $region21
  $region20: #{cnn_forward.1} parent=0 // pred_region
    _
  $region21: #{cnn_forward.1} parent=0 // pred_fallthru
    _
  // Predicated region
  $region22: #{cnn_forward.1} parent=0 // pred_check
    _
  $region23: #{cnn_forward.1} parent=0 // pred_check_branch
    %24 = sbr.rel (0) target = $region25
  $region24: #{cnn_forward.1} parent=0 // pred_region
    _
  $region25: #{cnn_forward.1} parent=0 // pred_fallthru
    _
  // Predicated region
  $region26: #{cnn_forward.1} parent=0 // pred_check
    _
  $region27: #{cnn_forward.1} parent=0 // pred_check_branch
    %26 = sbr.rel (0) target = $region29
  $region28: #{cnn_forward.1} parent=0 // pred_region
    _
  $region29: #{cnn_forward.1} parent=0 // pred_fallthru
    _
  // Predicated region
  $region30: #{cnn_forward.1} parent=0 // pred_check
    _
  $region31: #{cnn_forward.1} parent=0 // pred_check_branch
    %28 = sbr.rel (0) target = $region33
  $region32: #{cnn_forward.1} parent=0 // pred_region
    _
  $region33: #{cnn_forward.1} parent=0 // pred_fallthru
    _
  %v30 = vld [vmem:[%s0] sm:$0xff]
  %v31 = vld [vmem:[%s0 + $0x8] sm:$0xff]
  %v32 = vld [vmem:[%s0 + $0x10] sm:$0xff]
  %v33 = vld [vmem:[%s0 + $0x18] sm:$0xff]
  %v34 = vld [vmem:[%s0 + $0x20] sm:$0xff]
  %v35 = vld [vmem:[%s0 + $0x28] sm:$0xff]
  %v36 = vld [vmem:[%s0 + $0x30] sm:$0xff]
  %v37 = vld [vmem:[%s0 + $0x38] sm:$0xff]
  %v38 = vld [vmem:[%s0 + $0x40] sm:$0xff]
  %v39 = vld [vmem:[%s0 + $0x48] sm:$0xff]
  %v40 = vld [vmem:[%s0 + $0x50] sm:$0xff]
  %v41 = vld [vmem:[%s0 + $0x58] sm:$0xff]
  %v42 = vld [vmem:[%s0 + $0x60] sm:$0xff]
  %v43 = vld [vmem:[%s0 + $0x68] sm:$0xff]
  %v44 = vld [vmem:[%s0 + $0x70] sm:$0xff]
  %v45 = vld [vmem:[%s0 + $0x78] sm:$0xff]
  %v46 = vld [vmem:[%s0 + $0x80] sm:$0xff]
  %v47 = vld [vmem:[%s0 + $0x88] sm:$0xff]
  %v48 = vld [vmem:[%s0 + $0x90] sm:$0xff]
  %v49 = vld [vmem:[%s0 + $0x98] sm:$0xff]
  %v50 = vld [vmem:[%s0 + $0xa0] sm:$0xff]
  %v51 = vld [vmem:[%s0 + $0xa8] sm:$0xff]
  %v52 = vld [vmem:[%s0 + $0xb0] sm:$0xff]
  %v53 = vld [vmem:[%s0 + $0xb8] sm:$0xff]
  %v54 = vld [vmem:[%s0 + $0xc0] sm:$0xff]
  %v55 = vld [vmem:[%s0 + $0xc8] sm:$0xff]
  %v56 = vld [vmem:[%s0 + $0xd0] sm:$0xff]
  %v57 = vld [vmem:[%s0 + $0xd8] sm:$0xff]
  %v58 = vld [vmem:[%s0 + $0xe0] sm:$0xff]
  %v59 = vld [vmem:[%s0 + $0xe8] sm:$0xff]
  %v60 = vld [vmem:[%s0 + $0xf0] sm:$0xff]
  %v61 = vld [vmem:[%s0 + $0xf8] sm:$0xff]
  %v62 = vld [vmem:[%s0 + $0x100] sm:$0xff]
  %v63 = vld [vmem:[%s0 + $0x108] sm:$0xff]
  %v64 = vld [vmem:[%s0 + $0x110] sm:$0xff]
  %v65 = vld [vmem:[%s0 + $0x118] sm:$0xff]
  %v66 = vld [vmem:[%s0 + $0x120] sm:$0xff]
  %v67 = vld [vmem:[%s0 + $0x128] sm:$0xff]
  %v68 = vld [vmem:[%s0 + $0x130] sm:$0xff]
  %v69 = vld [vmem:[%s0 + $0x138] sm:$0xff]
  %v70 = vld [vmem:[%s0 + $0x140] sm:$0xff]
  %v71 = vld [vmem:[%s0 + $0x148] sm:$0xff]
  %v72 = vld [vmem:[%s0 + $0x150] sm:$0xff]
  %v73 = vld [vmem:[%s0 + $0x158] sm:$0xff]
  %v74 = vld [vmem:[%s0 + $0x160] sm:$0xff]
  %v75 = vld [vmem:[%s0 + $0x168] sm:$0xff]
  %v76 = vld [vmem:[%s0 + $0x170] sm:$0xff]
  %v77 = vld [vmem:[%s0 + $0x178] sm:$0xff]
  %v78 = vld [vmem:[%s0 + $0x180] sm:$0xff]
  %v79 = vld [vmem:[%s0 + $0x188] sm:$0xff]
  %v80 = vlaneseq
  %v81 = vand.u32 %v80, 127
  %82 = vset.pattern.permute.xlu0 0
  %83 = vperm.xlu0 %82, %v30
  %v84 = vpop.permute.xlu0 %83
  %85 = vset.pattern.permute.xlu0 0
  %86 = vperm.xlu0 %85, %v31
  %v87 = vpop.permute.xlu0 %86
  %88 = vset.pattern.permute.xlu0 0
  %89 = vperm.xlu0 %88, %v32
  %v90 = vpop.permute.xlu0 %89
  %91 = vset.pattern.permute.xlu0 0
  %92 = vperm.xlu0 %91, %v33
  %v93 = vpop.permute.xlu0 %92
  %94 = vset.pattern.permute.xlu0 0
  %95 = vperm.xlu0 %94, %v34
  %v96 = vpop.permute.xlu0 %95
  %97 = vset.pattern.permute.xlu0 0
  %98 = vperm.xlu0 %97, %v35
  %v99 = vpop.permute.xlu0 %98
  %100 = vset.pattern.permute.xlu0 0
  %101 = vperm.xlu0 %100, %v36
  %v102 = vpop.permute.xlu0 %101
  %103 = vset.pattern.permute.xlu0 0
  %104 = vperm.xlu0 %103, %v37
  %v105 = vpop.permute.xlu0 %104
  %106 = vset.pattern.permute.xlu0 0
  %107 = vperm.xlu0 %106, %v38
  %v108 = vpop.permute.xlu0 %107
  %109 = vset.pattern.permute.xlu0 0
  %110 = vperm.xlu0 %109, %v39
  %v111 = vpop.permute.xlu0 %110
  %112 = vset.pattern.permute.xlu0 0
  %113 = vperm.xlu0 %112, %v40
  %v114 = vpop.permute.xlu0 %113
  %115 = vset.pattern.permute.xlu0 0
  %116 = vperm.xlu0 %115, %v41
  %v117 = vpop.permute.xlu0 %116
  %118 = vset.pattern.permute.xlu0 0
  %119 = vperm.xlu0 %118, %v42
  %v120 = vpop.permute.xlu0 %119
  %121 = vset.pattern.permute.xlu0 0
  %122 = vperm.xlu0 %121, %v43
  %v123 = vpop.permute.xlu0 %122
  %124 = vset.pattern.permute.xlu0 0
  %125 = vperm.xlu0 %124, %v44
  %v126 = vpop.permute.xlu0 %125
  %127 = vset.pattern.permute.xlu0 0
  %128 = vperm.xlu0 %127, %v45
  %v129 = vpop.permute.xlu0 %128
  %130 = vset.pattern.permute.xlu0 0
  %131 = vperm.xlu0 %130, %v46
  %v132 = vpop.permute.xlu0 %131
  %133 = vset.pattern.permute.xlu0 0
  %134 = vperm.xlu0 %133, %v47
  %v135 = vpop.permute.xlu0 %134
  %136 = vset.pattern.permute.xlu0 0
  %137 = vperm.xlu0 %136, %v48
  %v138 = vpop.permute.xlu0 %137
  %139 = vset.pattern.permute.xlu0 0
  %140 = vperm.xlu0 %139, %v49
  %v141 = vpop.permute.xlu0 %140
  %142 = vset.pattern.permute.xlu0 0
  %143 = vperm.xlu0 %142, %v50
  %v144 = vpop.permute.xlu0 %143
  %145 = vset.pattern.permute.xlu0 0
  %146 = vperm.xlu0 %145, %v51
  %v147 = vpop.permute.xlu0 %146
  %148 = vset.pattern.permute.xlu0 0
  %149 = vperm.xlu0 %148, %v52
  %v150 = vpop.permute.xlu0 %149
  %151 = vset.pattern.permute.xlu0 0
  %152 = vperm.xlu0 %151, %v53
  %v153 = vpop.permute.xlu0 %152
  %154 = vset.pattern.permute.xlu0 0
  %155 = vperm.xlu0 %154, %v54
  %v156 = vpop.permute.xlu0 %155
  %157 = vset.pattern.permute.xlu0 0
  %158 = vperm.xlu0 %157, %v55
  %v159 = vpop.permute.xlu0 %158
  %160 = vset.pattern.permute.xlu0 0
  %161 = vperm.xlu0 %160, %v56
  %v162 = vpop.permute.xlu0 %161
  %163 = vset.pattern.permute.xlu0 0
  %164 = vperm.xlu0 %163, %v57
  %v165 = vpop.permute.xlu0 %164
  %166 = vset.pattern.permute.xlu0 0
  %167 = vperm.xlu0 %166, %v58
  %v168 = vpop.permute.xlu0 %167
  %169 = vset.pattern.permute.xlu0 0
  %170 = vperm.xlu0 %169, %v59
  %v171 = vpop.permute.xlu0 %170
  %172 = vset.pattern.permute.xlu0 0
  %173 = vperm.xlu0 %172, %v60
  %v174 = vpop.permute.xlu0 %173
  %175 = vset.pattern.permute.xlu0 0
  %176 = vperm.xlu0 %175, %v61
  %v177 = vpop.permute.xlu0 %176
  %178 = vset.pattern.permute.xlu0 0
  %179 = vperm.xlu0 %178, %v62
  %v180 = vpop.permute.xlu0 %179
  %181 = vset.pattern.permute.xlu0 0
  %182 = vperm.xlu0 %181, %v63
  %v183 = vpop.permute.xlu0 %182
  %184 = vset.pattern.permute.xlu0 0
  %185 = vperm.xlu0 %184, %v64
  %v186 = vpop.permute.xlu0 %185
  %187 = vset.pattern.permute.xlu0 0
  %188 = vperm.xlu0 %187, %v65
  %v189 = vpop.permute.xlu0 %188
  %190 = vset.pattern.permute.xlu0 0
  %191 = vperm.xlu0 %190, %v66
  %v192 = vpop.permute.xlu0 %191
  %193 = vset.pattern.permute.xlu0 0
  %194 = vperm.xlu0 %193, %v67
  %v195 = vpop.permute.xlu0 %194
  %196 = vset.pattern.permute.xlu0 0
  %197 = vperm.xlu0 %196, %v68
  %v198 = vpop.permute.xlu0 %197
  %199 = vset.pattern.permute.xlu0 0
  %200 = vperm.xlu0 %199, %v69
  %v201 = vpop.permute.xlu0 %200
  %202 = vset.pattern.permute.xlu0 0
  %203 = vperm.xlu0 %202, %v70
  %v204 = vpop.permute.xlu0 %203
  %205 = vset.pattern.permute.xlu0 0
  %206 = vperm.xlu0 %205, %v71
  %v207 = vpop.permute.xlu0 %206
  %208 = vset.pattern.permute.xlu0 0
  %209 = vperm.xlu0 %208, %v72
  %v210 = vpop.permute.xlu0 %209
  %211 = vset.pattern.permute.xlu0 0
  %212 = vperm.xlu0 %211, %v73
  %v213 = vpop.permute.xlu0 %212
  %214 = vset.pattern.permute.xlu0 0
  %215 = vperm.xlu0 %214, %v74
  %v216 = vpop.permute.xlu0 %215
  %217 = vset.pattern.permute.xlu0 0
  %218 = vperm.xlu0 %217, %v75
  %v219 = vpop.permute.xlu0 %218
  %220 = vset.pattern.permute.xlu0 0
  %221 = vperm.xlu0 %220, %v76
  %v222 = vpop.permute.xlu0 %221
  %223 = vset.pattern.permute.xlu0 0
  %224 = vperm.xlu0 %223, %v77
  %v225 = vpop.permute.xlu0 %224
  %226 = vset.pattern.permute.xlu0 0
  %227 = vperm.xlu0 %226, %v78
  %v228 = vpop.permute.xlu0 %227
  %229 = vset.pattern.permute.xlu0 0
  %230 = vperm.xlu0 %229, %v79
  %v231 = vpop.permute.xlu0 %230
  %vm232 = vcmp.eq.s32.totalorder %v81, %v84
  %vm233 = vcmp.eq.s32.totalorder %v81, %v87
  %vm234 = vcmp.eq.s32.totalorder %v81, %v90
  %vm235 = vcmp.eq.s32.totalorder %v81, %v93
  %vm236 = vcmp.eq.s32.totalorder %v81, %v96
  %vm237 = vcmp.eq.s32.totalorder %v81, %v99
  %vm238 = vcmp.eq.s32.totalorder %v81, %v102
  %vm239 = vcmp.eq.s32.totalorder %v81, %v105
  %vm240 = vcmp.eq.s32.totalorder %v81, %v108
  %vm241 = vcmp.eq.s32.totalorder %v81, %v111
  %vm242 = vcmp.eq.s32.totalorder %v81, %v114
  %vm243 = vcmp.eq.s32.totalorder %v81, %v117
  %vm244 = vcmp.eq.s32.totalorder %v81, %v120
  %vm245 = vcmp.eq.s32.totalorder %v81, %v123
  %vm246 = vcmp.eq.s32.totalorder %v81, %v126
  %vm247 = vcmp.eq.s32.totalorder %v81, %v129
  %vm248 = vcmp.eq.s32.totalorder %v81, %v132
  %vm249 = vcmp.eq.s32.totalorder %v81, %v135
  %vm250 = vcmp.eq.s32.totalorder %v81, %v138
  %vm251 = vcmp.eq.s32.totalorder %v81, %v141
  %vm252 = vcmp.eq.s32.totalorder %v81, %v144
  %vm253 = vcmp.eq.s32.totalorder %v81, %v147
  %vm254 = vcmp.eq.s32.totalorder %v81, %v150
  %vm255 = vcmp.eq.s32.totalorder %v81, %v153
  %vm256 = vcmp.eq.s32.totalorder %v81, %v156
  %vm257 = vcmp.eq.s32.totalorder %v81, %v159
  %vm258 = vcmp.eq.s32.totalorder %v81, %v162
  %vm259 = vcmp.eq.s32.totalorder %v81, %v165
  %vm260 = vcmp.eq.s32.totalorder %v81, %v168
  %vm261 = vcmp.eq.s32.totalorder %v81, %v171
  %vm262 = vcmp.eq.s32.totalorder %v81, %v174
  %vm263 = vcmp.eq.s32.totalorder %v81, %v177
  %vm264 = vcmp.eq.s32.totalorder %v81, %v180
  %vm265 = vcmp.eq.s32.totalorder %v81, %v183
  %vm266 = vcmp.eq.s32.totalorder %v81, %v186
  %vm267 = vcmp.eq.s32.totalorder %v81, %v189
  %vm268 = vcmp.eq.s32.totalorder %v81, %v192
  %vm269 = vcmp.eq.s32.totalorder %v81, %v195
  %vm270 = vcmp.eq.s32.totalorder %v81, %v198
  %vm271 = vcmp.eq.s32.totalorder %v81, %v201
  %vm272 = vcmp.eq.s32.totalorder %v81, %v204
  %vm273 = vcmp.eq.s32.totalorder %v81, %v207
  %vm274 = vcmp.eq.s32.totalorder %v81, %v210
  %vm275 = vcmp.eq.s32.totalorder %v81, %v213
  %vm276 = vcmp.eq.s32.totalorder %v81, %v216
  %vm277 = vcmp.eq.s32.totalorder %v81, %v219
  %vm278 = vcmp.eq.s32.totalorder %v81, %v222
  %vm279 = vcmp.eq.s32.totalorder %v81, %v225
  %vm280 = vcmp.eq.s32.totalorder %v81, %v228
  %vm281 = vcmp.eq.s32.totalorder %v81, %v231
  %v282 = vsel %vm232, 1, 0
  %v283 = vsel %vm233, 1, 0
  %v284 = vsel %vm234, 1, 0
  %v285 = vsel %vm235, 1, 0
  %v286 = vsel %vm236, 1, 0
  %v287 = vsel %vm237, 1, 0
  %v288 = vsel %vm238, 1, 0
  %v289 = vsel %vm239, 1, 0
  %v290 = vsel %vm240, 1, 0
  %v291 = vsel %vm241, 1, 0
  %v292 = vsel %vm242, 1, 0
  %v293 = vsel %vm243, 1, 0
  %v294 = vsel %vm244, 1, 0
  %v295 = vsel %vm245, 1, 0
  %v296 = vsel %vm246, 1, 0
  %v297 = vsel %vm247, 1, 0
  %v298 = vsel %vm248, 1, 0
  %v299 = vsel %vm249, 1, 0
  %v300 = vsel %vm250, 1, 0
  %v301 = vsel %vm251, 1, 0
  %v302 = vsel %vm252, 1, 0
  %v303 = vsel %vm253, 1, 0
  %v304 = vsel %vm254, 1, 0
  %v305 = vsel %vm255, 1, 0
  %v306 = vsel %vm256, 1, 0
  %v307 = vsel %vm257, 1, 0
  %v308 = vsel %vm258, 1, 0
  %v309 = vsel %vm259, 1, 0
  %v310 = vsel %vm260, 1, 0
  %v311 = vsel %vm261, 1, 0
  %v312 = vsel %vm262, 1, 0
  %v313 = vsel %vm263, 1, 0
  %v314 = vsel %vm264, 1, 0
  %v315 = vsel %vm265, 1, 0
  %v316 = vsel %vm266, 1, 0
  %v317 = vsel %vm267, 1, 0
  %v318 = vsel %vm268, 1, 0
  %v319 = vsel %vm269, 1, 0
  %v320 = vsel %vm270, 1, 0
  %v321 = vsel %vm271, 1, 0
  %v322 = vsel %vm272, 1, 0
  %v323 = vsel %vm273, 1, 0
  %v324 = vsel %vm274, 1, 0
  %v325 = vsel %vm275, 1, 0
  %v326 = vsel %vm276, 1, 0
  %v327 = vsel %vm277, 1, 0
  %v328 = vsel %vm278, 1, 0
  %v329 = vsel %vm279, 1, 0
  %v330 = vsel %vm280, 1, 0
  %v331 = vsel %vm281, 1, 0
  %v332 = vcvt.s32.f32 %v282
  %v333 = vcvt.s32.f32 %v283
  %v334 = vcvt.s32.f32 %v284
  %v335 = vcvt.s32.f32 %v285
  %v336 = vcvt.s32.f32 %v286
  %v337 = vcvt.s32.f32 %v287
  %v338 = vcvt.s32.f32 %v288
  %v339 = vcvt.s32.f32 %v289
  %v340 = vcvt.s32.f32 %v290
  %v341 = vcvt.s32.f32 %v291
  %v342 = vcvt.s32.f32 %v292
  %v343 = vcvt.s32.f32 %v293
  %v344 = vcvt.s32.f32 %v294
  %v345 = vcvt.s32.f32 %v295
  %v346 = vcvt.s32.f32 %v296
  %v347 = vcvt.s32.f32 %v297
  %v348 = vcvt.s32.f32 %v298
  %v349 = vcvt.s32.f32 %v299
  %v350 = vcvt.s32.f32 %v300
  %v351 = vcvt.s32.f32 %v301
  %v352 = vcvt.s32.f32 %v302
  %v353 = vcvt.s32.f32 %v303
  %v354 = vcvt.s32.f32 %v304
  %v355 = vcvt.s32.f32 %v305
  %v356 = vcvt.s32.f32 %v306
  %v357 = vcvt.s32.f32 %v307
  %v358 = vcvt.s32.f32 %v308
  %v359 = vcvt.s32.f32 %v309
  %v360 = vcvt.s32.f32 %v310
  %v361 = vcvt.s32.f32 %v311
  %v362 = vcvt.s32.f32 %v312
  %v363 = vcvt.s32.f32 %v313
  %v364 = vcvt.s32.f32 %v314
  %v365 = vcvt.s32.f32 %v315
  %v366 = vcvt.s32.f32 %v316
  %v367 = vcvt.s32.f32 %v317
  %v368 = vcvt.s32.f32 %v318
  %v369 = vcvt.s32.f32 %v319
  %v370 = vcvt.s32.f32 %v320
  %v371 = vcvt.s32.f32 %v321
  %v372 = vcvt.s32.f32 %v322
  %v373 = vcvt.s32.f32 %v323
  %v374 = vcvt.s32.f32 %v324
  %v375 = vcvt.s32.f32 %v325
  %v376 = vcvt.s32.f32 %v326
  %v377 = vcvt.s32.f32 %v327
  %v378 = vcvt.s32.f32 %v328
  %v379 = vcvt.s32.f32 %v329
  %v380 = vcvt.s32.f32 %v330
  %v381 = vcvt.s32.f32 %v331
  %v382 = vpack.c.bf16 %v333, %v332
  %v383 = vpack.c.bf16 %v335, %v334
  %v384 = vpack.c.bf16 %v337, %v336
  %v385 = vpack.c.bf16 %v339, %v338
  %v386 = vpack.c.bf16 %v341, %v340
  %v387 = vpack.c.bf16 %v343, %v342
  %v388 = vpack.c.bf16 %v345, %v344
  %v389 = vpack.c.bf16 %v347, %v346
  %v390 = vpack.c.bf16 %v349, %v348
  %v391 = vpack.c.bf16 %v351, %v350
  %v392 = vpack.c.bf16 %v353, %v352
  %v393 = vpack.c.bf16 %v355, %v354
  %v394 = vpack.c.bf16 %v357, %v356
  %v395 = vpack.c.bf16 %v359, %v358
  %v396 = vpack.c.bf16 %v361, %v360
  %v397 = vpack.c.bf16 %v363, %v362
  %v398 = vpack.c.bf16 %v365, %v364
  %v399 = vpack.c.bf16 %v367, %v366
  %v400 = vpack.c.bf16 %v369, %v368
  %v401 = vpack.c.bf16 %v371, %v370
  %v402 = vpack.c.bf16 %v373, %v372
  %v403 = vpack.c.bf16 %v375, %v374
  %v404 = vpack.c.bf16 %v377, %v376
  %v405 = vpack.c.bf16 %v379, %v378
  %v406 = vpack.c.bf16 %v381, %v380
  %v407 = vld [vmem:[%s1] sm:$0xf]
  %v408 = vld [vmem:[%s1 + $0x4] sm:$0xf]
  %v409 = vld [vmem:[%s1 + $0x8] sm:$0xf]
  %v410 = vld [vmem:[%s1 + $0xc] sm:$0xf]
  %v411 = vld [vmem:[%s1 + $0x10] sm:$0xf]
  %v417 = vunpack.c.l.b16 %v407
  %v418 = vunpack.c.l.b16 %v408
  %v419 = vunpack.c.l.b16 %v409
  %v420 = vunpack.c.l.b16 %v410
  %v421 = vunpack.c.l.b16 %v411
  %v422 = vpack.c.b16 %v418, %v417
  %v423 = vpack.c.b16 %v420, %v419
  %v424 = vpack.c.b16 %v421, %v421
  %vm427 = vcmask 326656
  %v429 = vsel %vm427, %v382, 0
  %v432 = vsel %vm427, %v383, 0
  %v435 = vsel %vm427, %v384, 0
  %v438 = vsel %vm427, %v385, 0
  %v441 = vsel %vm427, %v386, 0
  %v444 = vsel %vm427, %v387, 0
  %v447 = vsel %vm427, %v388, 0
  %v450 = vsel %vm427, %v389, 0
  %v453 = vsel %vm427, %v390, 0
  %v456 = vsel %vm427, %v391, 0
  %v459 = vsel %vm427, %v392, 0
  %v462 = vsel %vm427, %v393, 0
  %v465 = vsel %vm427, %v394, 0
  %v468 = vsel %vm427, %v395, 0
  %v471 = vsel %vm427, %v396, 0
  %v474 = vsel %vm427, %v397, 0
  %v477 = vsel %vm427, %v398, 0
  %v480 = vsel %vm427, %v399, 0
  %v483 = vsel %vm427, %v400, 0
  %v486 = vsel %vm427, %v401, 0
  %v489 = vsel %vm427, %v402, 0
  %v492 = vsel %vm427, %v403, 0
  %v495 = vsel %vm427, %v404, 0
  %v498 = vsel %vm427, %v405, 0
  %v501 = vsel %vm427, %v406, 0
  %vm503 = vcmask 1043456
  %v505 = vsel %vm503, %v424, 0
  %507 = vmatprep.subr.bf16.mxu0 0
  %508 = vmatpush1.bf16.msra.mxu0 0
  %509 = vmatprep.subr.bf16.mxu0 0
  %510 = vmatpush1.bf16.msra.mxu0 0
  %511 = vmatprep.subr.bf16.mxu0 0
  %512 = vmatpush1.bf16.msra.mxu0 0
  %513 = vmatprep.subr.bf16.mxu0 0
  %514 = vmatpush1.bf16.msra.mxu0 0
  %515 = vmatprep.subr.bf16.mxu0 0
  %516 = vmatpush1.bf16.msra.mxu0 0
  %517 = vmatprep.subr.bf16.mxu0 0
  %518 = vmatpush1.bf16.msra.mxu0 %v505
  %519 = vmatprep.subr.bf16.mxu0 0
  %520 = vmatpush1.bf16.msra.mxu0 %v423
  %521 = vmatprep.subr.bf16.mxu0 0
  %522 = vmatpush1.bf16.msra.mxu0 %v422
  %523 = vmatprep.subr.bf16.mxu0 0
  %524 = vmatpush2.bf16.msra.mxu0 0
  %525 = vmatprep.subr.bf16.mxu0 0
  %526 = vmatpush2.bf16.msra.mxu0 0
  %527 = vmatprep.subr.bf16.mxu0 0
  %528 = vmatpush2.bf16.msra.mxu0 0
  %529 = vmatprep.subr.bf16.mxu0 0
  %530 = vmatpush2.bf16.msra.mxu0 0
  %531 = vmatprep.subr.bf16.mxu0 0
  %532 = vmatpush2.bf16.msra.mxu0 0
  %533 = vmatprep.subr.bf16.mxu0 0
  %534 = vmatpush2.bf16.msra.mxu0 0
  %535 = vmatprep.subr.bf16.mxu0 0
  %536 = vmatpush2.bf16.msra.mxu0 0
  %537 = vmatprep.subr.bf16.mxu0 0
  %538 = vmatpush2.bf16.msra.mxu0 0
  %539 = vmatprep.mubr.bf16.mxu0 0
  %540 = vmatmul.mubr.bf16.gmra.mxu0 %v429
  %v541 = vpop.f32.mrf.mxu0
  %v542 = vadd.f32 0.0, %v541
  %v543 = vpop.f32.mrf.mxu0
  %v544 = vpop.f32.mrf.mxu0
  %v545 = vadd.f32 0.0, %v544
  %v546 = vpop.f32.mrf.mxu0
  %547 = vmatprep.mubr.bf16.mxu0 0
  %548 = vmatmul.mubr.bf16.gmra.mxu0 %v432
  %v549 = vpop.f32.mrf.mxu0
  %v550 = vadd.f32 0.0, %v549
  %v551 = vpop.f32.mrf.mxu0
  %v552 = vpop.f32.mrf.mxu0
  %v553 = vadd.f32 0.0, %v552
  %v554 = vpop.f32.mrf.mxu0
  %555 = vmatprep.mubr.bf16.mxu0 0
  %556 = vmatmul.mubr.bf16.gmra.mxu0 %v435
  %v557 = vpop.f32.mrf.mxu0
  %v558 = vadd.f32 0.0, %v557
  %v559 = vpop.f32.mrf.mxu0
  %v560 = vpop.f32.mrf.mxu0
  %v561 = vadd.f32 0.0, %v560
  %v562 = vpop.f32.mrf.mxu0
  %563 = vmatprep.mubr.bf16.mxu0 0
  %564 = vmatmul.mubr.bf16.gmra.mxu0 %v438
  %v565 = vpop.f32.mrf.mxu0
  %v566 = vadd.f32 0.0, %v565
  %v567 = vpop.f32.mrf.mxu0
  %v568 = vpop.f32.mrf.mxu0
  %v569 = vadd.f32 0.0, %v568
  %v570 = vpop.f32.mrf.mxu0
  %571 = vmatprep.mubr.bf16.mxu0 0
  %572 = vmatmul.mubr.bf16.gmra.mxu0 %v441
  %v573 = vpop.f32.mrf.mxu0
  %v574 = vadd.f32 0.0, %v573
  %v575 = vpop.f32.mrf.mxu0
  %v576 = vpop.f32.mrf.mxu0
  %v577 = vadd.f32 0.0, %v576
  %v578 = vpop.f32.mrf.mxu0
  %579 = vmatprep.mubr.bf16.mxu0 0
  %580 = vmatmul.mubr.bf16.gmra.mxu0 %v444
  %v581 = vpop.f32.mrf.mxu0
  %v582 = vadd.f32 0.0, %v581
  %v583 = vpop.f32.mrf.mxu0
  %v584 = vpop.f32.mrf.mxu0
  %v585 = vadd.f32 0.0, %v584
  %v586 = vpop.f32.mrf.mxu0
  %587 = vmatprep.mubr.bf16.mxu0 0
  %588 = vmatmul.mubr.bf16.gmra.mxu0 %v447
  %v589 = vpop.f32.mrf.mxu0
  %v590 = vadd.f32 0.0, %v589
  %v591 = vpop.f32.mrf.mxu0
  %v592 = vpop.f32.mrf.mxu0
  %v593 = vadd.f32 0.0, %v592
  %v594 = vpop.f32.mrf.mxu0
  %595 = vmatprep.mubr.bf16.mxu0 0
  %596 = vmatmul.mubr.bf16.gmra.mxu0 %v450
  %v597 = vpop.f32.mrf.mxu0
  %v598 = vadd.f32 0.0, %v597
  %v599 = vpop.f32.mrf.mxu0
  %v600 = vpop.f32.mrf.mxu0
  %v601 = vadd.f32 0.0, %v600
  %v602 = vpop.f32.mrf.mxu0
  %603 = vmatprep.mubr.bf16.mxu0 0
  %604 = vmatmul.mubr.bf16.gmra.mxu0 %v453
  %v605 = vpop.f32.mrf.mxu0
  %v606 = vadd.f32 0.0, %v605
  %v607 = vpop.f32.mrf.mxu0
  %v608 = vpop.f32.mrf.mxu0
  %v609 = vadd.f32 0.0, %v608
  %v610 = vpop.f32.mrf.mxu0
  %611 = vmatprep.mubr.bf16.mxu0 0
  %612 = vmatmul.mubr.bf16.gmra.mxu0 %v456
  %v613 = vpop.f32.mrf.mxu0
  %v614 = vadd.f32 0.0, %v613
  %v615 = vpop.f32.mrf.mxu0
  %v616 = vpop.f32.mrf.mxu0
  %v617 = vadd.f32 0.0, %v616
  %v618 = vpop.f32.mrf.mxu0
  %619 = vmatprep.mubr.bf16.mxu0 0
  %620 = vmatmul.mubr.bf16.gmra.mxu0 %v459
  %v621 = vpop.f32.mrf.mxu0
  %v622 = vadd.f32 0.0, %v621
  %v623 = vpop.f32.mrf.mxu0
  %v624 = vpop.f32.mrf.mxu0
  %v625 = vadd.f32 0.0, %v624
  %v626 = vpop.f32.mrf.mxu0
  %627 = vmatprep.mubr.bf16.mxu0 0
  %628 = vmatmul.mubr.bf16.gmra.mxu0 %v462
  %v629 = vpop.f32.mrf.mxu0
  %v630 = vadd.f32 0.0, %v629
  %v631 = vpop.f32.mrf.mxu0
  %v632 = vpop.f32.mrf.mxu0
  %v633 = vadd.f32 0.0, %v632
  %v634 = vpop.f32.mrf.mxu0
  %635 = vmatprep.mubr.bf16.mxu0 0
  %636 = vmatmul.mubr.bf16.gmra.mxu0 %v465
  %v637 = vpop.f32.mrf.mxu0
  %v638 = vadd.f32 0.0, %v637
  %v639 = vpop.f32.mrf.mxu0
  %v640 = vpop.f32.mrf.mxu0
  %v641 = vadd.f32 0.0, %v640
  %v642 = vpop.f32.mrf.mxu0
  %643 = vmatprep.mubr.bf16.mxu0 0
  %644 = vmatmul.mubr.bf16.gmra.mxu0 %v468
  %v645 = vpop.f32.mrf.mxu0
  %v646 = vadd.f32 0.0, %v645
  %v647 = vpop.f32.mrf.mxu0
  %v648 = vpop.f32.mrf.mxu0
  %v649 = vadd.f32 0.0, %v648
  %v650 = vpop.f32.mrf.mxu0
  %651 = vmatprep.mubr.bf16.mxu0 0
  %652 = vmatmul.mubr.bf16.gmra.mxu0 %v471
  %v653 = vpop.f32.mrf.mxu0
  %v654 = vadd.f32 0.0, %v653
  %v655 = vpop.f32.mrf.mxu0
  %v656 = vpop.f32.mrf.mxu0
  %v657 = vadd.f32 0.0, %v656
  %v658 = vpop.f32.mrf.mxu0
  %659 = vmatprep.mubr.bf16.mxu0 0
  %660 = vmatmul.mubr.bf16.gmra.mxu0 %v474
  %v661 = vpop.f32.mrf.mxu0
  %v662 = vadd.f32 0.0, %v661
  %v663 = vpop.f32.mrf.mxu0
  %v664 = vpop.f32.mrf.mxu0
  %v665 = vadd.f32 0.0, %v664
  %v666 = vpop.f32.mrf.mxu0
  %667 = vmatprep.mubr.bf16.mxu0 0
  %668 = vmatmul.mubr.bf16.gmra.mxu0 %v477
  %v669 = vpop.f32.mrf.mxu0
  %v670 = vadd.f32 0.0, %v669
  %v671 = vpop.f32.mrf.mxu0
  %v672 = vpop.f32.mrf.mxu0
  %v673 = vadd.f32 0.0, %v672
  %v674 = vpop.f32.mrf.mxu0
  %675 = vmatprep.mubr.bf16.mxu0 0
  %676 = vmatmul.mubr.bf16.gmra.mxu0 %v480
  %v677 = vpop.f32.mrf.mxu0
  %v678 = vadd.f32 0.0, %v677
  %v679 = vpop.f32.mrf.mxu0
  %v680 = vpop.f32.mrf.mxu0
  %v681 = vadd.f32 0.0, %v680
  %v682 = vpop.f32.mrf.mxu0
  %683 = vmatprep.mubr.bf16.mxu0 0
  %684 = vmatmul.mubr.bf16.gmra.mxu0 %v483
  %v685 = vpop.f32.mrf.mxu0
  %v686 = vadd.f32 0.0, %v685
  %v687 = vpop.f32.mrf.mxu0
  %v688 = vpop.f32.mrf.mxu0
  %v689 = vadd.f32 0.0, %v688
  %v690 = vpop.f32.mrf.mxu0
  %691 = vmatprep.mubr.bf16.mxu0 0
  %692 = vmatmul.mubr.bf16.gmra.mxu0 %v486
  %v693 = vpop.f32.mrf.mxu0
  %v694 = vadd.f32 0.0, %v693
  %v695 = vpop.f32.mrf.mxu0
  %v696 = vpop.f32.mrf.mxu0
  %v697 = vadd.f32 0.0, %v696
  %v698 = vpop.f32.mrf.mxu0
  %699 = vmatprep.mubr.bf16.mxu0 0
  %700 = vmatmul.mubr.bf16.gmra.mxu0 %v489
  %v701 = vpop.f32.mrf.mxu0
  %v702 = vadd.f32 0.0, %v701
  %v703 = vpop.f32.mrf.mxu0
  %v704 = vpop.f32.mrf.mxu0
  %v705 = vadd.f32 0.0, %v704
  %v706 = vpop.f32.mrf.mxu0
  %707 = vmatprep.mubr.bf16.mxu0 0
  %708 = vmatmul.mubr.bf16.gmra.mxu0 %v492
  %v709 = vpop.f32.mrf.mxu0
  %v710 = vadd.f32 0.0, %v709
  %v711 = vpop.f32.mrf.mxu0
  %v712 = vpop.f32.mrf.mxu0
  %v713 = vadd.f32 0.0, %v712
  %v714 = vpop.f32.mrf.mxu0
  %715 = vmatprep.mubr.bf16.mxu0 0
  %716 = vmatmul.mubr.bf16.gmra.mxu0 %v495
  %v717 = vpop.f32.mrf.mxu0
  %v718 = vadd.f32 0.0, %v717
  %v719 = vpop.f32.mrf.mxu0
  %v720 = vpop.f32.mrf.mxu0
  %v721 = vadd.f32 0.0, %v720
  %v722 = vpop.f32.mrf.mxu0
  %723 = vmatprep.mubr.bf16.mxu0 0
  %724 = vmatmul.mubr.bf16.gmra.mxu0 %v498
  %v725 = vpop.f32.mrf.mxu0
  %v726 = vadd.f32 0.0, %v725
  %v727 = vpop.f32.mrf.mxu0
  %v728 = vpop.f32.mrf.mxu0
  %v729 = vadd.f32 0.0, %v728
  %v730 = vpop.f32.mrf.mxu0
  %731 = vmatprep.mubr.bf16.mxu0 0
  %732 = vmatmul.mubr.bf16.gmra.mxu0 %v501
  %v733 = vpop.f32.mrf.mxu0
  %v734 = vadd.f32 0.0, %v733
  %v735 = vpop.f32.mrf.mxu0
  %v736 = vpop.f32.mrf.mxu0
  %v737 = vadd.f32 0.0, %v736
  %v738 = vpop.f32.mrf.mxu0
  %739 = vdwg.mxu0
  %v740 = vpack.c.bf16 %v545, %v542
  %v741 = vpack.c.bf16 %v553, %v550
  %v742 = vpack.c.bf16 %v561, %v558
  %v743 = vpack.c.bf16 %v569, %v566
  %v744 = vpack.c.bf16 %v577, %v574
  %v745 = vpack.c.bf16 %v585, %v582
  %v746 = vpack.c.bf16 %v593, %v590
  %v747 = vpack.c.bf16 %v601, %v598
  %v748 = vpack.c.bf16 %v609, %v606
  %v749 = vpack.c.bf16 %v617, %v614
  %v750 = vpack.c.bf16 %v625, %v622
  %v751 = vpack.c.bf16 %v633, %v630
  %v752 = vpack.c.bf16 %v641, %v638
  %v753 = vpack.c.bf16 %v649, %v646
  %v754 = vpack.c.bf16 %v657, %v654
  %v755 = vpack.c.bf16 %v665, %v662
  %v756 = vpack.c.bf16 %v673, %v670
  %v757 = vpack.c.bf16 %v681, %v678
  %v758 = vpack.c.bf16 %v689, %v686
  %v759 = vpack.c.bf16 %v697, %v694
  %v760 = vpack.c.bf16 %v705, %v702
  %v761 = vpack.c.bf16 %v713, %v710
  %v762 = vpack.c.bf16 %v721, %v718
  %v763 = vpack.c.bf16 %v729, %v726
  %v764 = vpack.c.bf16 %v737, %v734
  %v765 = vld [vmem:[%s2] sm:$0xf]
  %v766 = vld [vmem:[%s2 + $0x4] sm:$0xf]
  %v767 = vld [vmem:[%s2 + $0x8] sm:$0xf]
  %v768 = vld [vmem:[%s2 + $0xc] sm:$0xf]
  %v769 = vld [vmem:[%s2 + $0x10] sm:$0xf]
  %v770 = vld [vmem:[%s2 + $0x14] sm:$0xf]
  %v771 = vld [vmem:[%s2 + $0x18] sm:$0xf]
  %v772 = vld [vmem:[%s2 + $0x1c] sm:$0xf]
  %v773 = vld [vmem:[%s2 + $0x20] sm:$0xf]
  %v774 = vld [vmem:[%s2 + $0x24] sm:$0xf]
  %v775 = vld [vmem:[%s2 + $0x28] sm:$0xf]
  %v776 = vld [vmem:[%s2 + $0x2c] sm:$0xf]
  %v777 = vld [vmem:[%s2 + $0x30] sm:$0xf]
  %v778 = vld [vmem:[%s2 + $0x34] sm:$0xf]
  %v779 = vld [vmem:[%s2 + $0x38] sm:$0xf]
  %v780 = vld [vmem:[%s2 + $0x3c] sm:$0xf]
  %v797 = vunpack.c.l.b16 %v765
  %v798 = vunpack.c.l.b16 %v766
  %v799 = vunpack.c.l.b16 %v767
  %v800 = vunpack.c.l.b16 %v768
  %v801 = vunpack.c.l.b16 %v769
  %v802 = vunpack.c.l.b16 %v770
  %v803 = vunpack.c.l.b16 %v771
  %v804 = vunpack.c.l.b16 %v772
  %v805 = vunpack.c.l.b16 %v773
  %v806 = vunpack.c.l.b16 %v774
  %v807 = vunpack.c.l.b16 %v775
  %v808 = vunpack.c.l.b16 %v776
  %v809 = vunpack.c.l.b16 %v777
  %v810 = vunpack.c.l.b16 %v778
  %v811 = vunpack.c.l.b16 %v779
  %v812 = vunpack.c.l.b16 %v780
  %v813 = vpack.c.b16 %v798, %v797
  %v814 = vpack.c.b16 %v800, %v799
  %v815 = vpack.c.b16 %v802, %v801
  %v816 = vpack.c.b16 %v804, %v803
  %v817 = vpack.c.b16 %v806, %v805
  %v818 = vpack.c.b16 %v808, %v807
  %v819 = vpack.c.b16 %v810, %v809
  %v820 = vpack.c.b16 %v812, %v811
  %829 = vmatprep.subr.bf16.mxu0 0
  %830 = vmatpush1.bf16.msra.mxu0 %v820
  %831 = vmatprep.subr.bf16.mxu0 0
  %832 = vmatpush1.bf16.msra.mxu0 %v819
  %833 = vmatprep.subr.bf16.mxu0 0
  %834 = vmatpush1.bf16.msra.mxu0 %v818
  %835 = vmatprep.subr.bf16.mxu0 0
  %836 = vmatpush1.bf16.msra.mxu0 %v817
  %837 = vmatprep.subr.bf16.mxu0 0
  %838 = vmatpush1.bf16.msra.mxu0 %v816
  %839 = vmatprep.subr.bf16.mxu0 0
  %840 = vmatpush1.bf16.msra.mxu0 %v815
  %841 = vmatprep.subr.bf16.mxu0 0
  %842 = vmatpush1.bf16.msra.mxu0 %v814
  %843 = vmatprep.subr.bf16.mxu0 0
  %844 = vmatpush1.bf16.msra.mxu0 %v813
  %845 = vmatprep.subr.bf16.mxu0 0
  %846 = vmatpush2.bf16.msra.mxu0 0
  %847 = vmatprep.subr.bf16.mxu0 0
  %848 = vmatpush2.bf16.msra.mxu0 0
  %849 = vmatprep.subr.bf16.mxu0 0
  %850 = vmatpush2.bf16.msra.mxu0 0
  %851 = vmatprep.subr.bf16.mxu0 0
  %852 = vmatpush2.bf16.msra.mxu0 0
  %853 = vmatprep.subr.bf16.mxu0 0
  %854 = vmatpush2.bf16.msra.mxu0 0
  %855 = vmatprep.subr.bf16.mxu0 0
  %856 = vmatpush2.bf16.msra.mxu0 0
  %857 = vmatprep.subr.bf16.mxu0 0
  %858 = vmatpush2.bf16.msra.mxu0 0
  %859 = vmatprep.subr.bf16.mxu0 0
  %860 = vmatpush2.bf16.msra.mxu0 0
  %861 = vmatprep.mubr.bf16.mxu0 0
  %862 = vmatmul.mubr.bf16.gmra.mxu0 %v740
  %v863 = vpop.f32.mrf.mxu0
  %v864 = vadd.f32 0.0, %v863
  %v865 = vpop.f32.mrf.mxu0
  %v866 = vpop.f32.mrf.mxu0
  %v867 = vadd.f32 0.0, %v866
  %v868 = vpop.f32.mrf.mxu0
  %869 = vmatprep.mubr.bf16.mxu0 0
  %870 = vmatmul.mubr.bf16.gmra.mxu0 %v741
  %v871 = vpop.f32.mrf.mxu0
  %v872 = vadd.f32 0.0, %v871
  %v873 = vpop.f32.mrf.mxu0
  %v874 = vpop.f32.mrf.mxu0
  %v875 = vadd.f32 0.0, %v874
  %v876 = vpop.f32.mrf.mxu0
  %877 = vmatprep.mubr.bf16.mxu0 0
  %878 = vmatmul.mubr.bf16.gmra.mxu0 %v742
  %v879 = vpop.f32.mrf.mxu0
  %v880 = vadd.f32 0.0, %v879
  %v881 = vpop.f32.mrf.mxu0
  %v882 = vpop.f32.mrf.mxu0
  %v883 = vadd.f32 0.0, %v882
  %v884 = vpop.f32.mrf.mxu0
  %885 = vmatprep.mubr.bf16.mxu0 0
  %886 = vmatmul.mubr.bf16.gmra.mxu0 %v743
  %v887 = vpop.f32.mrf.mxu0
  %v888 = vadd.f32 0.0, %v887
  %v889 = vpop.f32.mrf.mxu0
  %v890 = vpop.f32.mrf.mxu0
  %v891 = vadd.f32 0.0, %v890
  %v892 = vpop.f32.mrf.mxu0
  %893 = vmatprep.mubr.bf16.mxu0 0
  %894 = vmatmul.mubr.bf16.gmra.mxu0 %v744
  %v895 = vpop.f32.mrf.mxu0
  %v896 = vadd.f32 0.0, %v895
  %v897 = vpop.f32.mrf.mxu0
  %v898 = vpop.f32.mrf.mxu0
  %v899 = vadd.f32 0.0, %v898
  %v900 = vpop.f32.mrf.mxu0
  %901 = vmatprep.mubr.bf16.mxu0 0
  %902 = vmatmul.mubr.bf16.gmra.mxu0 %v745
  %v903 = vpop.f32.mrf.mxu0
  %v904 = vadd.f32 0.0, %v903
  %v905 = vpop.f32.mrf.mxu0
  %v906 = vpop.f32.mrf.mxu0
  %v907 = vadd.f32 0.0, %v906
  %v908 = vpop.f32.mrf.mxu0
  %909 = vmatprep.mubr.bf16.mxu0 0
  %910 = vmatmul.mubr.bf16.gmra.mxu0 %v746
  %v911 = vpop.f32.mrf.mxu0
  %v912 = vadd.f32 0.0, %v911
  %v913 = vpop.f32.mrf.mxu0
  %v914 = vpop.f32.mrf.mxu0
  %v915 = vadd.f32 0.0, %v914
  %v916 = vpop.f32.mrf.mxu0
  %917 = vmatprep.mubr.bf16.mxu0 0
  %918 = vmatmul.mubr.bf16.gmra.mxu0 %v747
  %v919 = vpop.f32.mrf.mxu0
  %v920 = vadd.f32 0.0, %v919
  %v921 = vpop.f32.mrf.mxu0
  %v922 = vpop.f32.mrf.mxu0
  %v923 = vadd.f32 0.0, %v922
  %v924 = vpop.f32.mrf.mxu0
  %925 = vmatprep.mubr.bf16.mxu0 0
  %926 = vmatmul.mubr.bf16.gmra.mxu0 %v748
  %v927 = vpop.f32.mrf.mxu0
  %v928 = vadd.f32 0.0, %v927
  %v929 = vpop.f32.mrf.mxu0
  %v930 = vpop.f32.mrf.mxu0
  %v931 = vadd.f32 0.0, %v930
  %v932 = vpop.f32.mrf.mxu0
  %933 = vmatprep.mubr.bf16.mxu0 0
  %934 = vmatmul.mubr.bf16.gmra.mxu0 %v749
  %v935 = vpop.f32.mrf.mxu0
  %v936 = vadd.f32 0.0, %v935
  %v937 = vpop.f32.mrf.mxu0
  %v938 = vpop.f32.mrf.mxu0
  %v939 = vadd.f32 0.0, %v938
  %v940 = vpop.f32.mrf.mxu0
  %941 = vmatprep.mubr.bf16.mxu0 0
  %942 = vmatmul.mubr.bf16.gmra.mxu0 %v750
  %v943 = vpop.f32.mrf.mxu0
  %v944 = vadd.f32 0.0, %v943
  %v945 = vpop.f32.mrf.mxu0
  %v946 = vpop.f32.mrf.mxu0
  %v947 = vadd.f32 0.0, %v946
  %v948 = vpop.f32.mrf.mxu0
  %949 = vmatprep.mubr.bf16.mxu0 0
  %950 = vmatmul.mubr.bf16.gmra.mxu0 %v751
  %v951 = vpop.f32.mrf.mxu0
  %v952 = vadd.f32 0.0, %v951
  %v953 = vpop.f32.mrf.mxu0
  %v954 = vpop.f32.mrf.mxu0
  %v955 = vadd.f32 0.0, %v954
  %v956 = vpop.f32.mrf.mxu0
  %957 = vmatprep.mubr.bf16.mxu0 0
  %958 = vmatmul.mubr.bf16.gmra.mxu0 %v752
  %v959 = vpop.f32.mrf.mxu0
  %v960 = vadd.f32 0.0, %v959
  %v961 = vpop.f32.mrf.mxu0
  %v962 = vpop.f32.mrf.mxu0
  %v963 = vadd.f32 0.0, %v962
  %v964 = vpop.f32.mrf.mxu0
  %965 = vmatprep.mubr.bf16.mxu0 0
  %966 = vmatmul.mubr.bf16.gmra.mxu0 %v753
  %v967 = vpop.f32.mrf.mxu0
  %v968 = vadd.f32 0.0, %v967
  %v969 = vpop.f32.mrf.mxu0
  %v970 = vpop.f32.mrf.mxu0
  %v971 = vadd.f32 0.0, %v970
  %v972 = vpop.f32.mrf.mxu0
  %973 = vmatprep.mubr.bf16.mxu0 0
  %974 = vmatmul.mubr.bf16.gmra.mxu0 %v754
  %v975 = vpop.f32.mrf.mxu0
  %v976 = vadd.f32 0.0, %v975
  %v977 = vpop.f32.mrf.mxu0
  %v978 = vpop.f32.mrf.mxu0
  %v979 = vadd.f32 0.0, %v978
  %v980 = vpop.f32.mrf.mxu0
  %981 = vmatprep.mubr.bf16.mxu0 0
  %982 = vmatmul.mubr.bf16.gmra.mxu0 %v755
  %v983 = vpop.f32.mrf.mxu0
  %v984 = vadd.f32 0.0, %v983
  %v985 = vpop.f32.mrf.mxu0
  %v986 = vpop.f32.mrf.mxu0
  %v987 = vadd.f32 0.0, %v986
  %v988 = vpop.f32.mrf.mxu0
  %989 = vmatprep.mubr.bf16.mxu0 0
  %990 = vmatmul.mubr.bf16.gmra.mxu0 %v756
  %v991 = vpop.f32.mrf.mxu0
  %v992 = vadd.f32 0.0, %v991
  %v993 = vpop.f32.mrf.mxu0
  %v994 = vpop.f32.mrf.mxu0
  %v995 = vadd.f32 0.0, %v994
  %v996 = vpop.f32.mrf.mxu0
  %997 = vmatprep.mubr.bf16.mxu0 0
  %998 = vmatmul.mubr.bf16.gmra.mxu0 %v757
  %v999 = vpop.f32.mrf.mxu0
  %v1000 = vadd.f32 0.0, %v999
  %v1001 = vpop.f32.mrf.mxu0
  %v1002 = vpop.f32.mrf.mxu0
  %v1003 = vadd.f32 0.0, %v1002
  %v1004 = vpop.f32.mrf.mxu0
  %1005 = vmatprep.mubr.bf16.mxu0 0
  %1006 = vmatmul.mubr.bf16.gmra.mxu0 %v758
  %v1007 = vpop.f32.mrf.mxu0
  %v1008 = vadd.f32 0.0, %v1007
  %v1009 = vpop.f32.mrf.mxu0
  %v1010 = vpop.f32.mrf.mxu0
  %v1011 = vadd.f32 0.0, %v1010
  %v1012 = vpop.f32.mrf.mxu0
  %1013 = vmatprep.mubr.bf16.mxu0 0
  %1014 = vmatmul.mubr.bf16.gmra.mxu0 %v759
  %v1015 = vpop.f32.mrf.mxu0
  %v1016 = vadd.f32 0.0, %v1015
  %v1017 = vpop.f32.mrf.mxu0
  %v1018 = vpop.f32.mrf.mxu0
  %v1019 = vadd.f32 0.0, %v1018
  %v1020 = vpop.f32.mrf.mxu0
  %1021 = vmatprep.mubr.bf16.mxu0 0
  %1022 = vmatmul.mubr.bf16.gmra.mxu0 %v760
  %v1023 = vpop.f32.mrf.mxu0
  %v1024 = vadd.f32 0.0, %v1023
  %v1025 = vpop.f32.mrf.mxu0
  %v1026 = vpop.f32.mrf.mxu0
  %v1027 = vadd.f32 0.0, %v1026
  %v1028 = vpop.f32.mrf.mxu0
  %1029 = vmatprep.mubr.bf16.mxu0 0
  %1030 = vmatmul.mubr.bf16.gmra.mxu0 %v761
  %v1031 = vpop.f32.mrf.mxu0
  %v1032 = vadd.f32 0.0, %v1031
  %v1033 = vpop.f32.mrf.mxu0
  %v1034 = vpop.f32.mrf.mxu0
  %v1035 = vadd.f32 0.0, %v1034
  %v1036 = vpop.f32.mrf.mxu0
  %1037 = vmatprep.mubr.bf16.mxu0 0
  %1038 = vmatmul.mubr.bf16.gmra.mxu0 %v762
  %v1039 = vpop.f32.mrf.mxu0
  %v1040 = vadd.f32 0.0, %v1039
  %v1041 = vpop.f32.mrf.mxu0
  %v1042 = vpop.f32.mrf.mxu0
  %v1043 = vadd.f32 0.0, %v1042
  %v1044 = vpop.f32.mrf.mxu0
  %1045 = vmatprep.mubr.bf16.mxu0 0
  %1046 = vmatmul.mubr.bf16.gmra.mxu0 %v763
  %v1047 = vpop.f32.mrf.mxu0
  %v1048 = vadd.f32 0.0, %v1047
  %v1049 = vpop.f32.mrf.mxu0
  %v1050 = vpop.f32.mrf.mxu0
  %v1051 = vadd.f32 0.0, %v1050
  %v1052 = vpop.f32.mrf.mxu0
  %1053 = vmatprep.mubr.bf16.mxu0 0
  %1054 = vmatmul.mubr.bf16.gmra.mxu0 %v764
  %v1055 = vpop.f32.mrf.mxu0
  %v1056 = vadd.f32 0.0, %v1055
  %v1057 = vpop.f32.mrf.mxu0
  %v1058 = vpop.f32.mrf.mxu0
  %v1059 = vadd.f32 0.0, %v1058
  %v1060 = vpop.f32.mrf.mxu0
  %1061 = vdwg.mxu0
  %1110 = vrot.lane.b32.xlu0 %v867, 96
  %v1111 = vpop.permute.xlu0 %1110
  %1112 = vrot.lane.b32.xlu0 %v872, 96
  %v1113 = vpop.permute.xlu0 %1112
  %1114 = vrot.lane.b32.xlu0 %v875, 96
  %v1115 = vpop.permute.xlu0 %1114
  %1116 = vrot.lane.b32.xlu0 %v880, 96
  %v1117 = vpop.permute.xlu0 %1116
  %1118 = vrot.lane.b32.xlu0 %v883, 96
  %v1119 = vpop.permute.xlu0 %1118
  %1120 = vrot.lane.b32.xlu0 %v888, 96
  %v1121 = vpop.permute.xlu0 %1120
  %1122 = vrot.lane.b32.xlu0 %v891, 96
  %v1123 = vpop.permute.xlu0 %1122
  %1124 = vrot.lane.b32.xlu0 %v896, 96
  %v1125 = vpop.permute.xlu0 %1124
  %1126 = vrot.lane.b32.xlu0 %v899, 96
  %v1127 = vpop.permute.xlu0 %1126
  %1128 = vrot.lane.b32.xlu0 %v904, 96
  %v1129 = vpop.permute.xlu0 %1128
  %1130 = vrot.lane.b32.xlu0 %v907, 96
  %v1131 = vpop.permute.xlu0 %1130
  %1132 = vrot.lane.b32.xlu0 %v912, 96
  %v1133 = vpop.permute.xlu0 %1132
  %1134 = vrot.lane.b32.xlu0 %v915, 96
  %v1135 = vpop.permute.xlu0 %1134
  %1136 = vrot.lane.b32.xlu0 %v920, 96
  %v1137 = vpop.permute.xlu0 %1136
  %1138 = vrot.lane.b32.xlu0 %v923, 96
  %v1139 = vpop.permute.xlu0 %1138
  %1140 = vrot.lane.b32.xlu0 %v928, 96
  %v1141 = vpop.permute.xlu0 %1140
  %1142 = vrot.lane.b32.xlu0 %v931, 96
  %v1143 = vpop.permute.xlu0 %1142
  %1144 = vrot.lane.b32.xlu0 %v936, 96
  %v1145 = vpop.permute.xlu0 %1144
  %1146 = vrot.lane.b32.xlu0 %v939, 96
  %v1147 = vpop.permute.xlu0 %1146
  %1148 = vrot.lane.b32.xlu0 %v944, 96
  %v1149 = vpop.permute.xlu0 %1148
  %1150 = vrot.lane.b32.xlu0 %v947, 96
  %v1151 = vpop.permute.xlu0 %1150
  %1152 = vrot.lane.b32.xlu0 %v952, 96
  %v1153 = vpop.permute.xlu0 %1152
  %1154 = vrot.lane.b32.xlu0 %v955, 96
  %v1155 = vpop.permute.xlu0 %1154
  %1156 = vrot.lane.b32.xlu0 %v960, 96
  %v1157 = vpop.permute.xlu0 %1156
  %1158 = vrot.lane.b32.xlu0 %v963, 96
  %v1159 = vpop.permute.xlu0 %1158
  %1160 = vrot.lane.b32.xlu0 %v968, 96
  %v1161 = vpop.permute.xlu0 %1160
  %1162 = vrot.lane.b32.xlu0 %v971, 96
  %v1163 = vpop.permute.xlu0 %1162
  %1164 = vrot.lane.b32.xlu0 %v976, 96
  %v1165 = vpop.permute.xlu0 %1164
  %1166 = vrot.lane.b32.xlu0 %v979, 96
  %v1167 = vpop.permute.xlu0 %1166
  %1168 = vrot.lane.b32.xlu0 %v984, 96
  %v1169 = vpop.permute.xlu0 %1168
  %1170 = vrot.lane.b32.xlu0 %v987, 96
  %v1171 = vpop.permute.xlu0 %1170
  %1172 = vrot.lane.b32.xlu0 %v992, 96
  %v1173 = vpop.permute.xlu0 %1172
  %1174 = vrot.lane.b32.xlu0 %v995, 96
  %v1175 = vpop.permute.xlu0 %1174
  %1176 = vrot.lane.b32.xlu0 %v1000, 96
  %v1177 = vpop.permute.xlu0 %1176
  %1178 = vrot.lane.b32.xlu0 %v1003, 96
  %v1179 = vpop.permute.xlu0 %1178
  %1180 = vrot.lane.b32.xlu0 %v1008, 96
  %v1181 = vpop.permute.xlu0 %1180
  %1182 = vrot.lane.b32.xlu0 %v1011, 96
  %v1183 = vpop.permute.xlu0 %1182
  %1184 = vrot.lane.b32.xlu0 %v1016, 96
  %v1185 = vpop.permute.xlu0 %1184
  %1186 = vrot.lane.b32.xlu0 %v1019, 96
  %v1187 = vpop.permute.xlu0 %1186
  %1188 = vrot.lane.b32.xlu0 %v1024, 96
  %v1189 = vpop.permute.xlu0 %1188
  %1190 = vrot.lane.b32.xlu0 %v1027, 96
  %v1191 = vpop.permute.xlu0 %1190
  %1192 = vrot.lane.b32.xlu0 %v1032, 96
  %v1193 = vpop.permute.xlu0 %1192
  %1194 = vrot.lane.b32.xlu0 %v1035, 96
  %v1195 = vpop.permute.xlu0 %1194
  %1196 = vrot.lane.b32.xlu0 %v1040, 96
  %v1197 = vpop.permute.xlu0 %1196
  %1198 = vrot.lane.b32.xlu0 %v1043, 96
  %v1199 = vpop.permute.xlu0 %1198
  %1200 = vrot.lane.b32.xlu0 %v1048, 96
  %v1201 = vpop.permute.xlu0 %1200
  %1202 = vrot.lane.b32.xlu0 %v1051, 96
  %v1203 = vpop.permute.xlu0 %1202
  %1204 = vrot.lane.b32.xlu0 %v1056, 96
  %v1205 = vpop.permute.xlu0 %1204
  %v1254 = vadd.f32 %v864, %v1111
  %v1255 = vadd.f32 %v867, %v1113
  %v1256 = vadd.f32 %v872, %v1115
  %v1257 = vadd.f32 %v875, %v1117
  %v1258 = vadd.f32 %v880, %v1119
  %v1259 = vadd.f32 %v883, %v1121
  %v1260 = vadd.f32 %v888, %v1123
  %v1261 = vadd.f32 %v891, %v1125
  %v1262 = vadd.f32 %v896, %v1127
  %v1263 = vadd.f32 %v899, %v1129
  %v1264 = vadd.f32 %v904, %v1131
  %v1265 = vadd.f32 %v907, %v1133
  %v1266 = vadd.f32 %v912, %v1135
  %v1267 = vadd.f32 %v915, %v1137
  %v1268 = vadd.f32 %v920, %v1139
  %v1269 = vadd.f32 %v923, %v1141
  %v1270 = vadd.f32 %v928, %v1143
  %v1271 = vadd.f32 %v931, %v1145
  %v1272 = vadd.f32 %v936, %v1147
  %v1273 = vadd.f32 %v939, %v1149
  %v1274 = vadd.f32 %v944, %v1151
  %v1275 = vadd.f32 %v947, %v1153
  %v1276 = vadd.f32 %v952, %v1155
  %v1277 = vadd.f32 %v955, %v1157
  %v1278 = vadd.f32 %v960, %v1159
  %v1279 = vadd.f32 %v963, %v1161
  %v1280 = vadd.f32 %v968, %v1163
  %v1281 = vadd.f32 %v971, %v1165
  %v1282 = vadd.f32 %v976, %v1167
  %v1283 = vadd.f32 %v979, %v1169
  %v1284 = vadd.f32 %v984, %v1171
  %v1285 = vadd.f32 %v987, %v1173
  %v1286 = vadd.f32 %v992, %v1175
  %v1287 = vadd.f32 %v995, %v1177
  %v1288 = vadd.f32 %v1000, %v1179
  %v1289 = vadd.f32 %v1003, %v1181
  %v1290 = vadd.f32 %v1008, %v1183
  %v1291 = vadd.f32 %v1011, %v1185
  %v1292 = vadd.f32 %v1016, %v1187
  %v1293 = vadd.f32 %v1019, %v1189
  %v1294 = vadd.f32 %v1024, %v1191
  %v1295 = vadd.f32 %v1027, %v1193
  %v1296 = vadd.f32 %v1032, %v1195
  %v1297 = vadd.f32 %v1035, %v1197
  %v1298 = vadd.f32 %v1040, %v1199
  %v1299 = vadd.f32 %v1043, %v1201
  %v1300 = vadd.f32 %v1048, %v1203
  %v1301 = vadd.f32 %v1051, %v1205
  %1303 = vrot.lane.b32.xlu0 %v872, 64
  %v1304 = vpop.permute.xlu0 %1303
  %1305 = vrot.lane.b32.xlu0 %v875, 64
  %v1306 = vpop.permute.xlu0 %1305
  %1307 = vrot.lane.b32.xlu0 %v880, 64
  %v1308 = vpop.permute.xlu0 %1307
  %1309 = vrot.lane.b32.xlu0 %v883, 64
  %v1310 = vpop.permute.xlu0 %1309
  %1311 = vrot.lane.b32.xlu0 %v888, 64
  %v1312 = vpop.permute.xlu0 %1311
  %1313 = vrot.lane.b32.xlu0 %v891, 64
  %v1314 = vpop.permute.xlu0 %1313
  %1315 = vrot.lane.b32.xlu0 %v896, 64
  %v1316 = vpop.permute.xlu0 %1315
  %1317 = vrot.lane.b32.xlu0 %v899, 64
  %v1318 = vpop.permute.xlu0 %1317
  %1319 = vrot.lane.b32.xlu0 %v904, 64
  %v1320 = vpop.permute.xlu0 %1319
  %1321 = vrot.lane.b32.xlu0 %v907, 64
  %v1322 = vpop.permute.xlu0 %1321
  %1323 = vrot.lane.b32.xlu0 %v912, 64
  %v1324 = vpop.permute.xlu0 %1323
  %1325 = vrot.lane.b32.xlu0 %v915, 64
  %v1326 = vpop.permute.xlu0 %1325
  %1327 = vrot.lane.b32.xlu0 %v920, 64
  %v1328 = vpop.permute.xlu0 %1327
  %1329 = vrot.lane.b32.xlu0 %v923, 64
  %v1330 = vpop.permute.xlu0 %1329
  %1331 = vrot.lane.b32.xlu0 %v928, 64
  %v1332 = vpop.permute.xlu0 %1331
  %1333 = vrot.lane.b32.xlu0 %v931, 64
  %v1334 = vpop.permute.xlu0 %1333
  %1335 = vrot.lane.b32.xlu0 %v936, 64
  %v1336 = vpop.permute.xlu0 %1335
  %1337 = vrot.lane.b32.xlu0 %v939, 64
  %v1338 = vpop.permute.xlu0 %1337
  %1339 = vrot.lane.b32.xlu0 %v944, 64
  %v1340 = vpop.permute.xlu0 %1339
  %1341 = vrot.lane.b32.xlu0 %v947, 64
  %v1342 = vpop.permute.xlu0 %1341
  %1343 = vrot.lane.b32.xlu0 %v952, 64
  %v1344 = vpop.permute.xlu0 %1343
  %1345 = vrot.lane.b32.xlu0 %v955, 64
  %v1346 = vpop.permute.xlu0 %1345
  %1347 = vrot.lane.b32.xlu0 %v960, 64
  %v1348 = vpop.permute.xlu0 %1347
  %1349 = vrot.lane.b32.xlu0 %v963, 64
  %v1350 = vpop.permute.xlu0 %1349
  %1351 = vrot.lane.b32.xlu0 %v968, 64
  %v1352 = vpop.permute.xlu0 %1351
  %1353 = vrot.lane.b32.xlu0 %v971, 64
  %v1354 = vpop.permute.xlu0 %1353
  %1355 = vrot.lane.b32.xlu0 %v976, 64
  %v1356 = vpop.permute.xlu0 %1355
  %1357 = vrot.lane.b32.xlu0 %v979, 64
  %v1358 = vpop.permute.xlu0 %1357
  %1359 = vrot.lane.b32.xlu0 %v984, 64
  %v1360 = vpop.permute.xlu0 %1359
  %1361 = vrot.lane.b32.xlu0 %v987, 64
  %v1362 = vpop.permute.xlu0 %1361
  %1363 = vrot.lane.b32.xlu0 %v992, 64
  %v1364 = vpop.permute.xlu0 %1363
  %1365 = vrot.lane.b32.xlu0 %v995, 64
  %v1366 = vpop.permute.xlu0 %1365
  %1367 = vrot.lane.b32.xlu0 %v1000, 64
  %v1368 = vpop.permute.xlu0 %1367
  %1369 = vrot.lane.b32.xlu0 %v1003, 64
  %v1370 = vpop.permute.xlu0 %1369
  %1371 = vrot.lane.b32.xlu0 %v1008, 64
  %v1372 = vpop.permute.xlu0 %1371
  %1373 = vrot.lane.b32.xlu0 %v1011, 64
  %v1374 = vpop.permute.xlu0 %1373
  %1375 = vrot.lane.b32.xlu0 %v1016, 64
  %v1376 = vpop.permute.xlu0 %1375
  %1377 = vrot.lane.b32.xlu0 %v1019, 64
  %v1378 = vpop.permute.xlu0 %1377
  %1379 = vrot.lane.b32.xlu0 %v1024, 64
  %v1380 = vpop.permute.xlu0 %1379
  %1381 = vrot.lane.b32.xlu0 %v1027, 64
  %v1382 = vpop.permute.xlu0 %1381
  %1383 = vrot.lane.b32.xlu0 %v1032, 64
  %v1384 = vpop.permute.xlu0 %1383
  %1385 = vrot.lane.b32.xlu0 %v1035, 64
  %v1386 = vpop.permute.xlu0 %1385
  %1387 = vrot.lane.b32.xlu0 %v1040, 64
  %v1388 = vpop.permute.xlu0 %1387
  %1389 = vrot.lane.b32.xlu0 %v1043, 64
  %v1390 = vpop.permute.xlu0 %1389
  %1391 = vrot.lane.b32.xlu0 %v1048, 64
  %v1392 = vpop.permute.xlu0 %1391
  %1393 = vrot.lane.b32.xlu0 %v1051, 64
  %v1394 = vpop.permute.xlu0 %1393
  %1395 = vrot.lane.b32.xlu0 %v1056, 64
  %v1396 = vpop.permute.xlu0 %1395
  %1397 = vrot.lane.b32.xlu0 %v1059, 64
  %v1398 = vpop.permute.xlu0 %1397
  %v1447 = vadd.f32 %v1254, %v1304
  %v1448 = vadd.f32 %v1255, %v1306
  %v1449 = vadd.f32 %v1256, %v1308
  %v1450 = vadd.f32 %v1257, %v1310
  %v1451 = vadd.f32 %v1258, %v1312
  %v1452 = vadd.f32 %v1259, %v1314
  %v1453 = vadd.f32 %v1260, %v1316
  %v1454 = vadd.f32 %v1261, %v1318
  %v1455 = vadd.f32 %v1262, %v1320
  %v1456 = vadd.f32 %v1263, %v1322
  %v1457 = vadd.f32 %v1264, %v1324
  %v1458 = vadd.f32 %v1265, %v1326
  %v1459 = vadd.f32 %v1266, %v1328
  %v1460 = vadd.f32 %v1267, %v1330
  %v1461 = vadd.f32 %v1268, %v1332
  %v1462 = vadd.f32 %v1269, %v1334
  %v1463 = vadd.f32 %v1270, %v1336
  %v1464 = vadd.f32 %v1271, %v1338
  %v1465 = vadd.f32 %v1272, %v1340
  %v1466 = vadd.f32 %v1273, %v1342
  %v1467 = vadd.f32 %v1274, %v1344
  %v1468 = vadd.f32 %v1275, %v1346
  %v1469 = vadd.f32 %v1276, %v1348
  %v1470 = vadd.f32 %v1277, %v1350
  %v1471 = vadd.f32 %v1278, %v1352
  %v1472 = vadd.f32 %v1279, %v1354
  %v1473 = vadd.f32 %v1280, %v1356
  %v1474 = vadd.f32 %v1281, %v1358
  %v1475 = vadd.f32 %v1282, %v1360
  %v1476 = vadd.f32 %v1283, %v1362
  %v1477 = vadd.f32 %v1284, %v1364
  %v1478 = vadd.f32 %v1285, %v1366
  %v1479 = vadd.f32 %v1286, %v1368
  %v1480 = vadd.f32 %v1287, %v1370
  %v1481 = vadd.f32 %v1288, %v1372
  %v1482 = vadd.f32 %v1289, %v1374
  %v1483 = vadd.f32 %v1290, %v1376
  %v1484 = vadd.f32 %v1291, %v1378
  %v1485 = vadd.f32 %v1292, %v1380
  %v1486 = vadd.f32 %v1293, %v1382
  %v1487 = vadd.f32 %v1294, %v1384
  %v1488 = vadd.f32 %v1295, %v1386
  %v1489 = vadd.f32 %v1296, %v1388
  %v1490 = vadd.f32 %v1297, %v1390
  %v1491 = vadd.f32 %v1298, %v1392
  %v1492 = vadd.f32 %v1299, %v1394
  %v1493 = vadd.f32 %v1300, %v1396
  %v1494 = vadd.f32 %v1301, %v1398
  %v1495 = vld [vmem:[%s3] sm:$0x1]
  %v1497 = vlaneseq
  %v1498 = vshrl.u32 %v1497, 7
  %v1499 = vsub.s32 0, %v1498
  %v1500 = vrot.slane %v1495, %v1499
  %v1502 = vadd.f32 %v1447, %v1500
  %v1503 = vadd.f32 %v1448, %v1500
  %v1504 = vadd.f32 %v1449, %v1500
  %v1505 = vadd.f32 %v1450, %v1500
  %v1506 = vadd.f32 %v1451, %v1500
  %v1507 = vadd.f32 %v1452, %v1500
  %v1508 = vadd.f32 %v1453, %v1500
  %v1509 = vadd.f32 %v1454, %v1500
  %v1510 = vadd.f32 %v1455, %v1500
  %v1511 = vadd.f32 %v1456, %v1500
  %v1512 = vadd.f32 %v1457, %v1500
  %v1513 = vadd.f32 %v1458, %v1500
  %v1514 = vadd.f32 %v1459, %v1500
  %v1515 = vadd.f32 %v1460, %v1500
  %v1516 = vadd.f32 %v1461, %v1500
  %v1517 = vadd.f32 %v1462, %v1500
  %v1518 = vadd.f32 %v1463, %v1500
  %v1519 = vadd.f32 %v1464, %v1500
  %v1520 = vadd.f32 %v1465, %v1500
  %v1521 = vadd.f32 %v1466, %v1500
  %v1522 = vadd.f32 %v1467, %v1500
  %v1523 = vadd.f32 %v1468, %v1500
  %v1524 = vadd.f32 %v1469, %v1500
  %v1525 = vadd.f32 %v1470, %v1500
  %v1526 = vadd.f32 %v1471, %v1500
  %v1527 = vadd.f32 %v1472, %v1500
  %v1528 = vadd.f32 %v1473, %v1500
  %v1529 = vadd.f32 %v1474, %v1500
  %v1530 = vadd.f32 %v1475, %v1500
  %v1531 = vadd.f32 %v1476, %v1500
  %v1532 = vadd.f32 %v1477, %v1500
  %v1533 = vadd.f32 %v1478, %v1500
  %v1534 = vadd.f32 %v1479, %v1500
  %v1535 = vadd.f32 %v1480, %v1500
  %v1536 = vadd.f32 %v1481, %v1500
  %v1537 = vadd.f32 %v1482, %v1500
  %v1538 = vadd.f32 %v1483, %v1500
  %v1539 = vadd.f32 %v1484, %v1500
  %v1540 = vadd.f32 %v1485, %v1500
  %v1541 = vadd.f32 %v1486, %v1500
  %v1542 = vadd.f32 %v1487, %v1500
  %v1543 = vadd.f32 %v1488, %v1500
  %v1544 = vadd.f32 %v1489, %v1500
  %v1545 = vadd.f32 %v1490, %v1500
  %v1546 = vadd.f32 %v1491, %v1500
  %v1547 = vadd.f32 %v1492, %v1500
  %v1548 = vadd.f32 %v1493, %v1500
  %v1549 = vadd.f32 %v1494, %v1500
  %v1550 = vmax.f32 %v1502, %v1503
  %v1551 = vpack.c.bf16 %v1550, %v1550
  %vm1552 = vcmask 257024
  %1553 = vst.msk [vmem:[#allocation2] sm:$0xf] %vm1552, %v1551
  %v1554 = vmax.f32 %v1504, %v1505
  %v1555 = vpack.c.bf16 %v1554, %v1554
  %v1557 = vunpack.c.l.b16 %v1555
  %v1558 = vpack.c.b16 %v1557, %v1557
  %1559 = vrot.lane.b32.xlu0 %v1558, 32
  %v1560 = vpop.permute.xlu0 %1559
  %vm1562 = vcmask 519424
  %1563 = vst.msk [vmem:[#allocation2] sm:$0xf] %vm1562, %v1560
  %v1564 = vmax.f32 %v1506, %v1507
  %v1565 = vpack.c.bf16 %v1564, %v1564
  %v1567 = vunpack.c.l.b16 %v1565
  %v1568 = vpack.c.b16 %v1567, %v1567
  %1569 = vrot.lane.b32.xlu0 %v1568, 64
  %v1570 = vpop.permute.xlu0 %1569
  %vm1572 = vcmask 781824
  %1573 = vst.msk [vmem:[#allocation2] sm:$0xf] %vm1572, %v1570
  %v1574 = vmax.f32 %v1508, %v1509
  %v1575 = vpack.c.bf16 %v1574, %v1574
  %v1577 = vunpack.c.l.b16 %v1575
  %v1578 = vpack.c.b16 %v1577, %v1577
  %1579 = vrot.lane.b32.xlu0 %v1578, 96
  %v1580 = vpop.permute.xlu0 %1579
  %vm1582 = vcmask 1044224
  %1583 = vst.msk [vmem:[#allocation2] sm:$0xf] %vm1582, %v1580
  %v1584 = vmax.f32 %v1510, %v1511
  %v1585 = vpack.c.bf16 %v1584, %v1584
  %1586 = vst.msk [vmem:[#allocation2 + $0x4] sm:$0xf] %vm1552, %v1585
  %v1587 = vmax.f32 %v1512, %v1513
  %v1588 = vpack.c.bf16 %v1587, %v1587
  %v1590 = vunpack.c.l.b16 %v1588
  %v1591 = vpack.c.b16 %v1590, %v1590
  %1592 = vrot.lane.b32.xlu0 %v1591, 32
  %v1593 = vpop.permute.xlu0 %1592
  %1595 = vst.msk [vmem:[#allocation2 + $0x4] sm:$0xf] %vm1562, %v1593
  %v1596 = vmax.f32 %v1514, %v1515
  %v1597 = vpack.c.bf16 %v1596, %v1596
  %v1599 = vunpack.c.l.b16 %v1597
  %v1600 = vpack.c.b16 %v1599, %v1599
  %1601 = vrot.lane.b32.xlu0 %v1600, 64
  %v1602 = vpop.permute.xlu0 %1601
  %1604 = vst.msk [vmem:[#allocation2 + $0x4] sm:$0xf] %vm1572, %v1602
  %v1605 = vmax.f32 %v1516, %v1517
  %v1606 = vpack.c.bf16 %v1605, %v1605
  %v1608 = vunpack.c.l.b16 %v1606
  %v1609 = vpack.c.b16 %v1608, %v1608
  %1610 = vrot.lane.b32.xlu0 %v1609, 96
  %v1611 = vpop.permute.xlu0 %1610
  %1613 = vst.msk [vmem:[#allocation2 + $0x4] sm:$0xf] %vm1582, %v1611
  %v1614 = vmax.f32 %v1518, %v1519
  %v1615 = vpack.c.bf16 %v1614, %v1614
  %1616 = vst.msk [vmem:[#allocation2 + $0x8] sm:$0xf] %vm1552, %v1615
  %v1617 = vmax.f32 %v1520, %v1521
  %v1618 = vpack.c.bf16 %v1617, %v1617
  %v1620 = vunpack.c.l.b16 %v1618
  %v1621 = vpack.c.b16 %v1620, %v1620
  %1622 = vrot.lane.b32.xlu0 %v1621, 32
  %v1623 = vpop.permute.xlu0 %1622
  %1625 = vst.msk [vmem:[#allocation2 + $0x8] sm:$0xf] %vm1562, %v1623
  %v1626 = vmax.f32 %v1522, %v1523
  %v1627 = vpack.c.bf16 %v1626, %v1626
  %v1629 = vunpack.c.l.b16 %v1627
  %v1630 = vpack.c.b16 %v1629, %v1629
  %1631 = vrot.lane.b32.xlu0 %v1630, 64
  %v1632 = vpop.permute.xlu0 %1631
  %1634 = vst.msk [vmem:[#allocation2 + $0x8] sm:$0xf] %vm1572, %v1632
  %v1635 = vmax.f32 %v1524, %v1525
  %v1636 = vpack.c.bf16 %v1635, %v1635
  %v1638 = vunpack.c.l.b16 %v1636
  %v1639 = vpack.c.b16 %v1638, %v1638
  %1640 = vrot.lane.b32.xlu0 %v1639, 96
  %v1641 = vpop.permute.xlu0 %1640
  %1643 = vst.msk [vmem:[#allocation2 + $0x8] sm:$0xf] %vm1582, %v1641
  %v1644 = vmax.f32 %v1526, %v1527
  %v1645 = vpack.c.bf16 %v1644, %v1644
  %1646 = vst.msk [vmem:[#allocation2 + $0xc] sm:$0xf] %vm1552, %v1645
  %v1647 = vmax.f32 %v1528, %v1529
  %v1648 = vpack.c.bf16 %v1647, %v1647
  %v1650 = vunpack.c.l.b16 %v1648
  %v1651 = vpack.c.b16 %v1650, %v1650
  %1652 = vrot.lane.b32.xlu0 %v1651, 32
  %v1653 = vpop.permute.xlu0 %1652
  %1655 = vst.msk [vmem:[#allocation2 + $0xc] sm:$0xf] %vm1562, %v1653
  %v1656 = vmax.f32 %v1530, %v1531
  %v1657 = vpack.c.bf16 %v1656, %v1656
  %v1659 = vunpack.c.l.b16 %v1657
  %v1660 = vpack.c.b16 %v1659, %v1659
  %1661 = vrot.lane.b32.xlu0 %v1660, 64
  %v1662 = vpop.permute.xlu0 %1661
  %1664 = vst.msk [vmem:[#allocation2 + $0xc] sm:$0xf] %vm1572, %v1662
  %v1665 = vmax.f32 %v1532, %v1533
  %v1666 = vpack.c.bf16 %v1665, %v1665
  %v1668 = vunpack.c.l.b16 %v1666
  %v1669 = vpack.c.b16 %v1668, %v1668
  %1670 = vrot.lane.b32.xlu0 %v1669, 96
  %v1671 = vpop.permute.xlu0 %1670
  %1673 = vst.msk [vmem:[#allocation2 + $0xc] sm:$0xf] %vm1582, %v1671
  %v1674 = vmax.f32 %v1534, %v1535
  %v1675 = vpack.c.bf16 %v1674, %v1674
  %1676 = vst.msk [vmem:[#allocation2 + $0x10] sm:$0xf] %vm1552, %v1675
  %v1677 = vmax.f32 %v1536, %v1537
  %v1678 = vpack.c.bf16 %v1677, %v1677
  %v1680 = vunpack.c.l.b16 %v1678
  %v1681 = vpack.c.b16 %v1680, %v1680
  %1682 = vrot.lane.b32.xlu0 %v1681, 32
  %v1683 = vpop.permute.xlu0 %1682
  %1685 = vst.msk [vmem:[#allocation2 + $0x10] sm:$0xf] %vm1562, %v1683
  %v1686 = vmax.f32 %v1538, %v1539
  %v1687 = vpack.c.bf16 %v1686, %v1686
  %v1689 = vunpack.c.l.b16 %v1687
  %v1690 = vpack.c.b16 %v1689, %v1689
  %1691 = vrot.lane.b32.xlu0 %v1690, 64
  %v1692 = vpop.permute.xlu0 %1691
  %1694 = vst.msk [vmem:[#allocation2 + $0x10] sm:$0xf] %vm1572, %v1692
  %v1695 = vmax.f32 %v1540, %v1541
  %v1696 = vpack.c.bf16 %v1695, %v1695
  %v1698 = vunpack.c.l.b16 %v1696
  %v1699 = vpack.c.b16 %v1698, %v1698
  %1700 = vrot.lane.b32.xlu0 %v1699, 96
  %v1701 = vpop.permute.xlu0 %1700
  %1703 = vst.msk [vmem:[#allocation2 + $0x10] sm:$0xf] %vm1582, %v1701
  %v1704 = vmax.f32 %v1542, %v1543
  %v1705 = vpack.c.bf16 %v1704, %v1704
  %1706 = vst.msk [vmem:[#allocation2 + $0x14] sm:$0xf] %vm1552, %v1705
  %v1707 = vmax.f32 %v1544, %v1545
  %v1708 = vpack.c.bf16 %v1707, %v1707
  %v1710 = vunpack.c.l.b16 %v1708
  %v1711 = vpack.c.b16 %v1710, %v1710
  %1712 = vrot.lane.b32.xlu0 %v1711, 32
  %v1713 = vpop.permute.xlu0 %1712
  %1715 = vst.msk [vmem:[#allocation2 + $0x14] sm:$0xf] %vm1562, %v1713
  %v1716 = vmax.f32 %v1546, %v1547
  %v1717 = vpack.c.bf16 %v1716, %v1716
  %v1719 = vunpack.c.l.b16 %v1717
  %v1720 = vpack.c.b16 %v1719, %v1719
  %1721 = vrot.lane.b32.xlu0 %v1720, 64
  %v1722 = vpop.permute.xlu0 %1721
  %1724 = vst.msk [vmem:[#allocation2 + $0x14] sm:$0xf] %vm1572, %v1722
  %v1725 = vmax.f32 %v1548, %v1549
  %v1726 = vpack.c.bf16 %v1725, %v1725
  %v1728 = vunpack.c.l.b16 %v1726
  %v1729 = vpack.c.b16 %v1728, %v1728
  %1730 = vrot.lane.b32.xlu0 %v1729, 96
  %v1731 = vpop.permute.xlu0 %1730
  %1733 = vst.msk [vmem:[#allocation2 + $0x14] sm:$0xf] %vm1582, %v1731
  %v1734 = vld [vmem:[#allocation2] sm:$0xff]
  %v1735 = vld [vmem:[#allocation2 + $0x8] sm:$0xff]
  %v1736 = vld [vmem:[#allocation2 + $0x10] sm:$0xff]
  %v1737 = vld [vmem:[%s4] sm:$0xf]
  %v1738 = vld [vmem:[%s4 + $0x4] sm:$0xf]
  %v1739 = vld [vmem:[%s4 + $0x8] sm:$0xf]
  %v1740 = vld [vmem:[%s4 + $0xc] sm:$0xf]
  %v1741 = vld [vmem:[%s4 + $0x10] sm:$0xf]
  %v1742 = vld [vmem:[%s4 + $0x14] sm:$0xf]
  %v1743 = vld [vmem:[%s4 + $0x18] sm:$0xf]
  %v1744 = vld [vmem:[%s4 + $0x1c] sm:$0xf]
  %v1745 = vld [vmem:[%s4 + $0x20] sm:$0xf]
  %v1746 = vld [vmem:[%s4 + $0x24] sm:$0xf]
  %v1747 = vld [vmem:[%s4 + $0x28] sm:$0xf]
  %v1748 = vld [vmem:[%s4 + $0x2c] sm:$0xf]
  %v1749 = vld [vmem:[%s4 + $0x30] sm:$0xf]
  %v1750 = vld [vmem:[%s4 + $0x34] sm:$0xf]
  %v1751 = vld [vmem:[%s4 + $0x38] sm:$0xf]
  %v1752 = vld [vmem:[%s4 + $0x3c] sm:$0xf]
  %v1753 = vld [vmem:[%s4 + $0x40] sm:$0xf]
  %v1754 = vld [vmem:[%s4 + $0x44] sm:$0xf]
  %v1755 = vld [vmem:[%s4 + $0x48] sm:$0xf]
  %v1756 = vld [vmem:[%s4 + $0x4c] sm:$0xf]
  %v1757 = vld [vmem:[%s4 + $0x50] sm:$0xf]
  %v1758 = vld [vmem:[%s4 + $0x54] sm:$0xf]
  %v1759 = vld [vmem:[%s4 + $0x58] sm:$0xf]
  %v1760 = vld [vmem:[%s4 + $0x5c] sm:$0xf]
  %v1761 = vld [vmem:[%s4 + $0x60] sm:$0xf]
  %v1762 = vld [vmem:[%s4 + $0x64] sm:$0xf]
  %v1763 = vld [vmem:[%s4 + $0x68] sm:$0xf]
  %v1764 = vld [vmem:[%s4 + $0x6c] sm:$0xf]
  %v1765 = vld [vmem:[%s4 + $0x70] sm:$0xf]
  %v1766 = vld [vmem:[%s4 + $0x74] sm:$0xf]
  %v1767 = vld [vmem:[%s4 + $0x78] sm:$0xf]
  %v1768 = vld [vmem:[%s4 + $0x7c] sm:$0xf]
  %v1769 = vld [vmem:[%s4 + $0x80] sm:$0xf]
  %v1770 = vld [vmem:[%s4 + $0x84] sm:$0xf]
  %v1771 = vld [vmem:[%s4 + $0x88] sm:$0xf]
  %v1772 = vld [vmem:[%s4 + $0x8c] sm:$0xf]
  %v1773 = vld [vmem:[%s4 + $0x90] sm:$0xf]
  %v1774 = vld [vmem:[%s4 + $0x94] sm:$0xf]
  %v1775 = vld [vmem:[%s4 + $0x98] sm:$0xf]
  %v1776 = vld [vmem:[%s4 + $0x9c] sm:$0xf]
  %v1777 = vld [vmem:[%s4 + $0xa0] sm:$0xf]
  %v1778 = vld [vmem:[%s4 + $0xa4] sm:$0xf]
  %v1779 = vld [vmem:[%s4 + $0xa8] sm:$0xf]
  %v1780 = vld [vmem:[%s4 + $0xac] sm:$0xf]
  %v1781 = vld [vmem:[%s4 + $0xb0] sm:$0xf]
  %v1782 = vld [vmem:[%s4 + $0xb4] sm:$0xf]
  %v1783 = vld [vmem:[%s4 + $0xb8] sm:$0xf]
  %v1784 = vld [vmem:[%s4 + $0xbc] sm:$0xf]
  %v1785 = vld [vmem:[%s4 + $0xc0] sm:$0xf]
  %v1786 = vld [vmem:[%s4 + $0xc4] sm:$0xf]
  %v1787 = vld [vmem:[%s4 + $0xc8] sm:$0xf]
  %v1788 = vld [vmem:[%s4 + $0xcc] sm:$0xf]
  %v1789 = vld [vmem:[%s4 + $0xd0] sm:$0xf]
  %v1790 = vld [vmem:[%s4 + $0xd4] sm:$0xf]
  %v1791 = vld [vmem:[%s4 + $0xd8] sm:$0xf]
  %v1792 = vld [vmem:[%s4 + $0xdc] sm:$0xf]
  %v1793 = vld [vmem:[%s4 + $0xe0] sm:$0xf]
  %v1794 = vld [vmem:[%s4 + $0xe4] sm:$0xf]
  %v1795 = vld [vmem:[%s4 + $0xe8] sm:$0xf]
  %v1796 = vld [vmem:[%s4 + $0xec] sm:$0xf]
  %v1797 = vld [vmem:[%s4 + $0xf0] sm:$0xf]
  %v1798 = vld [vmem:[%s4 + $0xf4] sm:$0xf]
  %v1799 = vld [vmem:[%s4 + $0xf8] sm:$0xf]
  %v1800 = vld [vmem:[%s4 + $0xfc] sm:$0xf]
  %v1801 = vld [vmem:[%s4 + $0x100] sm:$0xf]
  %v1802 = vld [vmem:[%s4 + $0x104] sm:$0xf]
  %v1803 = vld [vmem:[%s4 + $0x108] sm:$0xf]
  %v1804 = vld [vmem:[%s4 + $0x10c] sm:$0xf]
  %v1805 = vld [vmem:[%s4 + $0x110] sm:$0xf]
  %v1806 = vld [vmem:[%s4 + $0x114] sm:$0xf]
  %v1807 = vld [vmem:[%s4 + $0x118] sm:$0xf]
  %v1808 = vld [vmem:[%s4 + $0x11c] sm:$0xf]
  %v1809 = vld [vmem:[%s4 + $0x120] sm:$0xf]
  %v1810 = vld [vmem:[%s4 + $0x124] sm:$0xf]
  %v1811 = vld [vmem:[%s4 + $0x128] sm:$0xf]
  %v1812 = vld [vmem:[%s4 + $0x12c] sm:$0xf]
  %v1813 = vld [vmem:[%s4 + $0x130] sm:$0xf]
  %v1814 = vld [vmem:[%s4 + $0x134] sm:$0xf]
  %v1815 = vld [vmem:[%s4 + $0x138] sm:$0xf]
  %v1816 = vld [vmem:[%s4 + $0x13c] sm:$0xf]
  %v1817 = vld [vmem:[%s4 + $0x140] sm:$0xf]
  %v1818 = vld [vmem:[%s4 + $0x144] sm:$0xf]
  %v1819 = vld [vmem:[%s4 + $0x148] sm:$0xf]
  %v1820 = vld [vmem:[%s4 + $0x14c] sm:$0xf]
  %v1821 = vld [vmem:[%s4 + $0x150] sm:$0xf]
  %v1822 = vld [vmem:[%s4 + $0x154] sm:$0xf]
  %v1823 = vld [vmem:[%s4 + $0x158] sm:$0xf]
  %v1824 = vld [vmem:[%s4 + $0x15c] sm:$0xf]
  %v1825 = vld [vmem:[%s4 + $0x160] sm:$0xf]
  %v1826 = vld [vmem:[%s4 + $0x164] sm:$0xf]
  %v1827 = vld [vmem:[%s4 + $0x168] sm:$0xf]
  %v1828 = vld [vmem:[%s4 + $0x16c] sm:$0xf]
  %v1829 = vld [vmem:[%s4 + $0x170] sm:$0xf]
  %v1830 = vld [vmem:[%s4 + $0x174] sm:$0xf]
  %v1831 = vld [vmem:[%s4 + $0x178] sm:$0xf]
  %v1832 = vld [vmem:[%s4 + $0x17c] sm:$0xf]
  %v1833 = vld [vmem:[%s5] sm:$0x1]
  %v1835 = vlaneseq
  %v1836 = vshrl.u32 %v1835, 7
  %v1837 = vsub.s32 0, %v1836
  %v1838 = vrot.slane %v1833, %v1837
  %v1843 = vunpack.c.l.b16 %v1734
  %v1844 = vunpack.c.h.b16 %v1734
  %v1845 = vunpack.c.l.b16 %v1735
  %v1846 = vunpack.c.h.b16 %v1735
  %v1847 = vunpack.c.l.b16 %v1736
  %v1848 = vunpack.c.h.b16 %v1736
  %v1849 = vpack.c.b16 %v1843, %v1843
  %v1850 = vpack.c.b16 %v1844, %v1844
  %v1851 = vpack.c.b16 %v1845, %v1845
  %v1852 = vpack.c.b16 %v1846, %v1846
  %v1853 = vpack.c.b16 %v1847, %v1847
  %v1854 = vpack.c.b16 %v1848, %v1848
  %v1957 = vunpack.c.l.b16 %v1737
  %v1958 = vunpack.c.l.b16 %v1738
  %v1959 = vunpack.c.l.b16 %v1739
  %v1960 = vunpack.c.l.b16 %v1740
  %v1961 = vunpack.c.l.b16 %v1741
  %v1962 = vunpack.c.l.b16 %v1742
  %v1963 = vunpack.c.l.b16 %v1743
  %v1964 = vunpack.c.l.b16 %v1744
  %v1965 = vunpack.c.l.b16 %v1745
  %v1966 = vunpack.c.l.b16 %v1746
  %v1967 = vunpack.c.l.b16 %v1747
  %v1968 = vunpack.c.l.b16 %v1748
  %v1969 = vunpack.c.l.b16 %v1749
  %v1970 = vunpack.c.l.b16 %v1750
  %v1971 = vunpack.c.l.b16 %v1751
  %v1972 = vunpack.c.l.b16 %v1752
  %v1973 = vunpack.c.l.b16 %v1753
  %v1974 = vunpack.c.l.b16 %v1754
  %v1975 = vunpack.c.l.b16 %v1755
  %v1976 = vunpack.c.l.b16 %v1756
  %v1977 = vunpack.c.l.b16 %v1757
  %v1978 = vunpack.c.l.b16 %v1758
  %v1979 = vunpack.c.l.b16 %v1759
  %v1980 = vunpack.c.l.b16 %v1760
  %v1981 = vunpack.c.l.b16 %v1761
  %v1982 = vunpack.c.l.b16 %v1762
  %v1983 = vunpack.c.l.b16 %v1763
  %v1984 = vunpack.c.l.b16 %v1764
  %v1985 = vunpack.c.l.b16 %v1765
  %v1986 = vunpack.c.l.b16 %v1766
  %v1987 = vunpack.c.l.b16 %v1767
  %v1988 = vunpack.c.l.b16 %v1768
  %v1989 = vunpack.c.l.b16 %v1769
  %v1990 = vunpack.c.l.b16 %v1770
  %v1991 = vunpack.c.l.b16 %v1771
  %v1992 = vunpack.c.l.b16 %v1772
  %v1993 = vunpack.c.l.b16 %v1773
  %v1994 = vunpack.c.l.b16 %v1774
  %v1995 = vunpack.c.l.b16 %v1775
  %v1996 = vunpack.c.l.b16 %v1776
  %v1997 = vunpack.c.l.b16 %v1777
  %v1998 = vunpack.c.l.b16 %v1778
  %v1999 = vunpack.c.l.b16 %v1779
  %v2000 = vunpack.c.l.b16 %v1780
  %v2001 = vunpack.c.l.b16 %v1781
  %v2002 = vunpack.c.l.b16 %v1782
  %v2003 = vunpack.c.l.b16 %v1783
  %v2004 = vunpack.c.l.b16 %v1784
  %v2005 = vunpack.c.l.b16 %v1785
  %v2006 = vunpack.c.l.b16 %v1786
  %v2007 = vunpack.c.l.b16 %v1787
  %v2008 = vunpack.c.l.b16 %v1788
  %v2009 = vunpack.c.l.b16 %v1789
  %v2010 = vunpack.c.l.b16 %v1790
  %v2011 = vunpack.c.l.b16 %v1791
  %v2012 = vunpack.c.l.b16 %v1792
  %v2013 = vunpack.c.l.b16 %v1793
  %v2014 = vunpack.c.l.b16 %v1794
  %v2015 = vunpack.c.l.b16 %v1795
  %v2016 = vunpack.c.l.b16 %v1796
  %v2017 = vunpack.c.l.b16 %v1797
  %v2018 = vunpack.c.l.b16 %v1798
  %v2019 = vunpack.c.l.b16 %v1799
  %v2020 = vunpack.c.l.b16 %v1800
  %v2021 = vunpack.c.l.b16 %v1801
  %v2022 = vunpack.c.l.b16 %v1802
  %v2023 = vunpack.c.l.b16 %v1803
  %v2024 = vunpack.c.l.b16 %v1804
  %v2025 = vunpack.c.l.b16 %v1805
  %v2026 = vunpack.c.l.b16 %v1806
  %v2027 = vunpack.c.l.b16 %v1807
  %v2028 = vunpack.c.l.b16 %v1808
  %v2029 = vunpack.c.l.b16 %v1809
  %v2030 = vunpack.c.l.b16 %v1810
  %v2031 = vunpack.c.l.b16 %v1811
  %v2032 = vunpack.c.l.b16 %v1812
  %v2033 = vunpack.c.l.b16 %v1813
  %v2034 = vunpack.c.l.b16 %v1814
  %v2035 = vunpack.c.l.b16 %v1815
  %v2036 = vunpack.c.l.b16 %v1816
  %v2037 = vunpack.c.l.b16 %v1817
  %v2038 = vunpack.c.l.b16 %v1818
  %v2039 = vunpack.c.l.b16 %v1819
  %v2040 = vunpack.c.l.b16 %v1820
  %v2041 = vunpack.c.l.b16 %v1821
  %v2042 = vunpack.c.l.b16 %v1822
  %v2043 = vunpack.c.l.b16 %v1823
  %v2044 = vunpack.c.l.b16 %v1824
  %v2045 = vunpack.c.l.b16 %v1825
  %v2046 = vunpack.c.l.b16 %v1826
  %v2047 = vunpack.c.l.b16 %v1827
  %v2048 = vunpack.c.l.b16 %v1828
  %v2049 = vunpack.c.l.b16 %v1829
  %v2050 = vunpack.c.l.b16 %v1830
  %v2051 = vunpack.c.l.b16 %v1831
  %v2052 = vunpack.c.l.b16 %v1832
  %v2053 = vpack.c.b16 %v1958, %v1957
  %v2054 = vpack.c.b16 %v1960, %v1959
  %v2055 = vpack.c.b16 %v1962, %v1961
  %v2056 = vpack.c.b16 %v1964, %v1963
  %v2057 = vpack.c.b16 %v1966, %v1965
  %v2058 = vpack.c.b16 %v1968, %v1967
  %v2059 = vpack.c.b16 %v1970, %v1969
  %v2060 = vpack.c.b16 %v1972, %v1971
  %v2061 = vpack.c.b16 %v1974, %v1973
  %v2062 = vpack.c.b16 %v1976, %v1975
  %v2063 = vpack.c.b16 %v1978, %v1977
  %v2064 = vpack.c.b16 %v1980, %v1979
  %v2065 = vpack.c.b16 %v1982, %v1981
  %v2066 = vpack.c.b16 %v1984, %v1983
  %v2067 = vpack.c.b16 %v1986, %v1985
  %v2068 = vpack.c.b16 %v1988, %v1987
  %v2069 = vpack.c.b16 %v1990, %v1989
  %v2070 = vpack.c.b16 %v1992, %v1991
  %v2071 = vpack.c.b16 %v1994, %v1993
  %v2072 = vpack.c.b16 %v1996, %v1995
  %v2073 = vpack.c.b16 %v1998, %v1997
  %v2074 = vpack.c.b16 %v2000, %v1999
  %v2075 = vpack.c.b16 %v2002, %v2001
  %v2076 = vpack.c.b16 %v2004, %v2003
  %v2077 = vpack.c.b16 %v2006, %v2005
  %v2078 = vpack.c.b16 %v2008, %v2007
  %v2079 = vpack.c.b16 %v2010, %v2009
  %v2080 = vpack.c.b16 %v2012, %v2011
  %v2081 = vpack.c.b16 %v2014, %v2013
  %v2082 = vpack.c.b16 %v2016, %v2015
  %v2083 = vpack.c.b16 %v2018, %v2017
  %v2084 = vpack.c.b16 %v2020, %v2019
  %v2085 = vpack.c.b16 %v2022, %v2021
  %v2086 = vpack.c.b16 %v2024, %v2023
  %v2087 = vpack.c.b16 %v2026, %v2025
  %v2088 = vpack.c.b16 %v2028, %v2027
  %v2089 = vpack.c.b16 %v2030, %v2029
  %v2090 = vpack.c.b16 %v2032, %v2031
  %v2091 = vpack.c.b16 %v2034, %v2033
  %v2092 = vpack.c.b16 %v2036, %v2035
  %v2093 = vpack.c.b16 %v2038, %v2037
  %v2094 = vpack.c.b16 %v2040, %v2039
  %v2095 = vpack.c.b16 %v2042, %v2041
  %v2096 = vpack.c.b16 %v2044, %v2043
  %v2097 = vpack.c.b16 %v2046, %v2045
  %v2098 = vpack.c.b16 %v2048, %v2047
  %v2099 = vpack.c.b16 %v2050, %v2049
  %v2100 = vpack.c.b16 %v2052, %v2051
  %2149 = vmatprep.subr.bf16.mxu0 0
  %2150 = vmatpush1.bf16.msra.mxu0 %v2060
  %2151 = vmatprep.subr.bf16.mxu0 0
  %2152 = vmatpush1.bf16.msra.mxu0 %v2059
  %2153 = vmatprep.subr.bf16.mxu0 0
  %2154 = vmatpush1.bf16.msra.mxu0 %v2058
  %2155 = vmatprep.subr.bf16.mxu0 0
  %2156 = vmatpush1.bf16.msra.mxu0 %v2057
  %2157 = vmatprep.subr.bf16.mxu0 0
  %2158 = vmatpush1.bf16.msra.mxu0 %v2056
  %2159 = vmatprep.subr.bf16.mxu0 0
  %2160 = vmatpush1.bf16.msra.mxu0 %v2055
  %2161 = vmatprep.subr.bf16.mxu0 0
  %2162 = vmatpush1.bf16.msra.mxu0 %v2054
  %2163 = vmatprep.subr.bf16.mxu0 0
  %2164 = vmatpush1.bf16.msra.mxu0 %v2053
  %2165 = vmatprep.subr.bf16.mxu0 0
  %2166 = vmatpush2.bf16.msra.mxu0 %v2068
  %2167 = vmatprep.subr.bf16.mxu0 0
  %2168 = vmatpush2.bf16.msra.mxu0 %v2067
  %2169 = vmatprep.subr.bf16.mxu0 0
  %2170 = vmatpush2.bf16.msra.mxu0 %v2066
  %2171 = vmatprep.subr.bf16.mxu0 0
  %2172 = vmatpush2.bf16.msra.mxu0 %v2065
  %2173 = vmatprep.subr.bf16.mxu0 0
  %2174 = vmatpush2.bf16.msra.mxu0 %v2064
  %2175 = vmatprep.subr.bf16.mxu0 0
  %2176 = vmatpush2.bf16.msra.mxu0 %v2063
  %2177 = vmatprep.subr.bf16.mxu0 0
  %2178 = vmatpush2.bf16.msra.mxu0 %v2062
  %2179 = vmatprep.subr.bf16.mxu0 0
  %2180 = vmatpush2.bf16.msra.mxu0 %v2061
  %2181 = vmatprep.mubr.bf16.mxu0 %v1850
  %2182 = vmatmul.mubr.bf16.gmra.mxu0 %v1849
  %v2183 = vpop.f32.mrf.mxu0
  %v2184 = vadd.f32 %v1838, %v2183
  %v2185 = vpop.f32.mrf.mxu0
  %v2186 = vpop.f32.mrf.mxu0
  %v2187 = vpop.f32.mrf.mxu0
  %2188 = vdwg.mxu0
  %2189 = vmatprep.subr.bf16.mxu0 0
  %2190 = vmatpush1.bf16.msra.mxu0 %v2076
  %2191 = vmatprep.subr.bf16.mxu0 0
  %2192 = vmatpush1.bf16.msra.mxu0 %v2075
  %2193 = vmatprep.subr.bf16.mxu0 0
  %2194 = vmatpush1.bf16.msra.mxu0 %v2074
  %2195 = vmatprep.subr.bf16.mxu0 0
  %2196 = vmatpush1.bf16.msra.mxu0 %v2073
  %2197 = vmatprep.subr.bf16.mxu0 0
  %2198 = vmatpush1.bf16.msra.mxu0 %v2072
  %2199 = vmatprep.subr.bf16.mxu0 0
  %2200 = vmatpush1.bf16.msra.mxu0 %v2071
  %2201 = vmatprep.subr.bf16.mxu0 0
  %2202 = vmatpush1.bf16.msra.mxu0 %v2070
  %2203 = vmatprep.subr.bf16.mxu0 0
  %2204 = vmatpush1.bf16.msra.mxu0 %v2069
  %2205 = vmatprep.subr.bf16.mxu0 0
  %2206 = vmatpush2.bf16.msra.mxu0 %v2084
  %2207 = vmatprep.subr.bf16.mxu0 0
  %2208 = vmatpush2.bf16.msra.mxu0 %v2083
  %2209 = vmatprep.subr.bf16.mxu0 0
  %2210 = vmatpush2.bf16.msra.mxu0 %v2082
  %2211 = vmatprep.subr.bf16.mxu0 0
  %2212 = vmatpush2.bf16.msra.mxu0 %v2081
  %2213 = vmatprep.subr.bf16.mxu0 0
  %2214 = vmatpush2.bf16.msra.mxu0 %v2080
  %2215 = vmatprep.subr.bf16.mxu0 0
  %2216 = vmatpush2.bf16.msra.mxu0 %v2079
  %2217 = vmatprep.subr.bf16.mxu0 0
  %2218 = vmatpush2.bf16.msra.mxu0 %v2078
  %2219 = vmatprep.subr.bf16.mxu0 0
  %2220 = vmatpush2.bf16.msra.mxu0 %v2077
  %2221 = vmatprep.mubr.bf16.mxu0 %v1852
  %2222 = vmatmul.mubr.bf16.gmra.mxu0 %v1851
  %v2223 = vpop.f32.mrf.mxu0
  %v2224 = vadd.f32 %v2184, %v2223
  %v2225 = vpop.f32.mrf.mxu0
  %v2226 = vpop.f32.mrf.mxu0
  %v2227 = vpop.f32.mrf.mxu0
  %2228 = vdwg.mxu0
  %2229 = vmatprep.subr.bf16.mxu0 0
  %2230 = vmatpush1.bf16.msra.mxu0 %v2092
  %2231 = vmatprep.subr.bf16.mxu0 0
  %2232 = vmatpush1.bf16.msra.mxu0 %v2091
  %2233 = vmatprep.subr.bf16.mxu0 0
  %2234 = vmatpush1.bf16.msra.mxu0 %v2090
  %2235 = vmatprep.subr.bf16.mxu0 0
  %2236 = vmatpush1.bf16.msra.mxu0 %v2089
  %2237 = vmatprep.subr.bf16.mxu0 0
  %2238 = vmatpush1.bf16.msra.mxu0 %v2088
  %2239 = vmatprep.subr.bf16.mxu0 0
  %2240 = vmatpush1.bf16.msra.mxu0 %v2087
  %2241 = vmatprep.subr.bf16.mxu0 0
  %2242 = vmatpush1.bf16.msra.mxu0 %v2086
  %2243 = vmatprep.subr.bf16.mxu0 0
  %2244 = vmatpush1.bf16.msra.mxu0 %v2085
  %2245 = vmatprep.subr.bf16.mxu0 0
  %2246 = vmatpush2.bf16.msra.mxu0 %v2100
  %2247 = vmatprep.subr.bf16.mxu0 0
  %2248 = vmatpush2.bf16.msra.mxu0 %v2099
  %2249 = vmatprep.subr.bf16.mxu0 0
  %2250 = vmatpush2.bf16.msra.mxu0 %v2098
  %2251 = vmatprep.subr.bf16.mxu0 0
  %2252 = vmatpush2.bf16.msra.mxu0 %v2097
  %2253 = vmatprep.subr.bf16.mxu0 0
  %2254 = vmatpush2.bf16.msra.mxu0 %v2096
  %2255 = vmatprep.subr.bf16.mxu0 0
  %2256 = vmatpush2.bf16.msra.mxu0 %v2095
  %2257 = vmatprep.subr.bf16.mxu0 0
  %2258 = vmatpush2.bf16.msra.mxu0 %v2094
  %2259 = vmatprep.subr.bf16.mxu0 0
  %2260 = vmatpush2.bf16.msra.mxu0 %v2093
  %2261 = vmatprep.mubr.bf16.mxu0 %v1854
  %2262 = vmatmul.mubr.bf16.gmra.mxu0 %v1853
  %v2263 = vpop.f32.mrf.mxu0
  %v2264 = vadd.f32 %v2224, %v2263
  %v2265 = vpop.f32.mrf.mxu0
  %v2266 = vpop.f32.mrf.mxu0
  %v2267 = vpop.f32.mrf.mxu0
  %2268 = vdwg.mxu0
  %v2269 = vpack.c.bf16 %v2264, %v2264
  %v2270 = vld [vmem:[%s6] sm:$0xf]
  %v2271 = vld [vmem:[%s6 + $0x4] sm:$0xf]
  %v2272 = vld [vmem:[%s6 + $0x8] sm:$0xf]
  %v2273 = vld [vmem:[%s6 + $0xc] sm:$0xf]
  %v2274 = vld [vmem:[%s6 + $0x10] sm:$0xf]
  %v2275 = vld [vmem:[%s6 + $0x14] sm:$0xf]
  %v2276 = vld [vmem:[%s6 + $0x18] sm:$0xf]
  %v2277 = vld [vmem:[%s6 + $0x1c] sm:$0xf]
  %v2278 = vld [vmem:[%s6 + $0x20] sm:$0xf]
  %v2279 = vld [vmem:[%s6 + $0x24] sm:$0xf]
  %v2280 = vld [vmem:[%s6 + $0x28] sm:$0xf]
  %v2281 = vld [vmem:[%s6 + $0x2c] sm:$0xf]
  %v2282 = vld [vmem:[%s6 + $0x30] sm:$0xf]
  %v2283 = vld [vmem:[%s6 + $0x34] sm:$0xf]
  %v2284 = vld [vmem:[%s6 + $0x38] sm:$0xf]
  %v2285 = vld [vmem:[%s6 + $0x3c] sm:$0xf]
  %v2286 = vld [vmem:[%s7] sm:$0x1]
  %v2288 = vlaneseq
  %v2289 = vshrl.u32 %v2288, 7
  %v2290 = vsub.s32 0, %v2289
  %v2291 = vrot.slane %v2286, %v2290
  %v2309 = vunpack.c.l.b16 %v2270
  %v2310 = vunpack.c.l.b16 %v2271
  %v2311 = vunpack.c.l.b16 %v2272
  %v2312 = vunpack.c.l.b16 %v2273
  %v2313 = vunpack.c.l.b16 %v2274
  %v2314 = vunpack.c.l.b16 %v2275
  %v2315 = vunpack.c.l.b16 %v2276
  %v2316 = vunpack.c.l.b16 %v2277
  %v2317 = vunpack.c.l.b16 %v2278
  %v2318 = vunpack.c.l.b16 %v2279
  %v2319 = vunpack.c.l.b16 %v2280
  %v2320 = vunpack.c.l.b16 %v2281
  %v2321 = vunpack.c.l.b16 %v2282
  %v2322 = vunpack.c.l.b16 %v2283
  %v2323 = vunpack.c.l.b16 %v2284
  %v2324 = vunpack.c.l.b16 %v2285
  %v2325 = vpack.c.b16 %v2310, %v2309
  %v2326 = vpack.c.b16 %v2312, %v2311
  %v2327 = vpack.c.b16 %v2314, %v2313
  %v2328 = vpack.c.b16 %v2316, %v2315
  %v2329 = vpack.c.b16 %v2318, %v2317
  %v2330 = vpack.c.b16 %v2320, %v2319
  %v2331 = vpack.c.b16 %v2322, %v2321
  %v2332 = vpack.c.b16 %v2324, %v2323
  %2341 = vmatprep.subr.bf16.mxu0 0
  %2342 = vmatpush1.bf16.msra.mxu0 %v2332
  %2343 = vmatprep.subr.bf16.mxu0 0
  %2344 = vmatpush1.bf16.msra.mxu0 %v2331
  %2345 = vmatprep.subr.bf16.mxu0 0
  %2346 = vmatpush1.bf16.msra.mxu0 %v2330
  %2347 = vmatprep.subr.bf16.mxu0 0
  %2348 = vmatpush1.bf16.msra.mxu0 %v2329
  %2349 = vmatprep.subr.bf16.mxu0 0
  %2350 = vmatpush1.bf16.msra.mxu0 %v2328
  %2351 = vmatprep.subr.bf16.mxu0 0
  %2352 = vmatpush1.bf16.msra.mxu0 %v2327
  %2353 = vmatprep.subr.bf16.mxu0 0
  %2354 = vmatpush1.bf16.msra.mxu0 %v2326
  %2355 = vmatprep.subr.bf16.mxu0 0
  %2356 = vmatpush1.bf16.msra.mxu0 %v2325
  %2357 = vmatprep.subr.bf16.mxu0 0
  %2358 = vmatpush2.bf16.msra.mxu0 0
  %2359 = vmatprep.subr.bf16.mxu0 0
  %2360 = vmatpush2.bf16.msra.mxu0 0
  %2361 = vmatprep.subr.bf16.mxu0 0
  %2362 = vmatpush2.bf16.msra.mxu0 0
  %2363 = vmatprep.subr.bf16.mxu0 0
  %2364 = vmatpush2.bf16.msra.mxu0 0
  %2365 = vmatprep.subr.bf16.mxu0 0
  %2366 = vmatpush2.bf16.msra.mxu0 0
  %2367 = vmatprep.subr.bf16.mxu0 0
  %2368 = vmatpush2.bf16.msra.mxu0 0
  %2369 = vmatprep.subr.bf16.mxu0 0
  %2370 = vmatpush2.bf16.msra.mxu0 0
  %2371 = vmatprep.subr.bf16.mxu0 0
  %2372 = vmatpush2.bf16.msra.mxu0 0
  %2373 = vmatprep.mubr.bf16.mxu0 0
  %2374 = vmatmul.mubr.bf16.gmra.mxu0 %v2269
  %v2375 = vpop.f32.mrf.mxu0
  %v2376 = vadd.f32 %v2291, %v2375
  %v2377 = vpop.f32.mrf.mxu0
  %v2378 = vpop.f32.mrf.mxu0
  %v2379 = vpop.f32.mrf.mxu0
  %2380 = vdwg.mxu0
  %vm2381 = vcmask 162816
  %2382 = vst.msk [vmem:[%s8] sm:$0xff] %vm2381, %v2376
  // Predicated region
  $region34: #{cnn_forward.1} parent=0 // pred_check
    _
  $region35: #{cnn_forward.1} parent=0 // pred_check_branch
    %2384 = sbr.rel (0) target = $region37
  $region36: #{cnn_forward.1} parent=0 // pred_region
    _
  $region37: #{cnn_forward.1} parent=0 // pred_fallthru
    _
  // Predicated region
  $region38: #{cnn_forward.1} parent=0 // pred_check
    _
  $region39: #{cnn_forward.1} parent=0 // pred_check_branch
    %2386 = sbr.rel (0) target = $region41
  $region40: #{cnn_forward.1} parent=0 // pred_region
    _
  $region41: #{cnn_forward.1} parent=0 // pred_fallthru
    _

</llo_original>
